<compile_context>
chip_gen: v6e
topology: v6e:2x2x1
jax: 0.10.0
libtpu: 0.0.40
codegen_flags: <defaults>
</compile_context>

<pallas_src>
import math
import jax
import jax.numpy as jnp
from jax import lax
from jax.experimental import pallas as pl
from jax.experimental.pallas import tpu as pltpu

HIDDEN = 32
NUM_HEADS = 4
HEAD_SIZE = HIDDEN // NUM_HEADS
SEQ = 8
BATCH = 2


def mha_kernel(x_ref, w_ref, b_ref, o_ref, ctx_ref):
    # x_ref: (B*S, H)
    # w_ref: (H, 4H) = [Wq*scale | Wk | Wv | Wo]   (lane-dense, exactly one lane tile)
    # b_ref: (1, 4H) = [bq*scale | bk | bv | bo]
    # ctx_ref: (B*S, H) f32 VMEM scratch for the merged per-head contexts.
    x = x_ref[...]
    w = w_ref[...]
    bias = b_ref[...]

    # Fused Q/K/V projection as one full-width MXU push. Columns 0:3H are the
    # (scaled) Q | K | V activations; columns 3H:4H (x @ Wo + bo) are unused
    # filler that keeps the matmul 128 lanes wide.
    y = jnp.dot(x, w, preferred_element_type=jnp.float32) + bias      # (B*S, 4H)

    # Per-(batch, head) attention from static lane/sublane slices.  No stacked
    # (NH, S, D) arrays, no concatenates: each head's context goes directly
    # into its 8-lane strip of the VMEM scratch.
    for bi in range(BATCH):
        r0 = bi * SEQ
        for h in range(NUM_HEADS):
            c0 = h * HEAD_SIZE
            q = y[r0:r0 + SEQ, c0:c0 + HEAD_SIZE]                      # (S, D)
            k = y[r0:r0 + SEQ, HIDDEN + c0:HIDDEN + c0 + HEAD_SIZE]    # (S, D)
            v = y[r0:r0 + SEQ, 2 * HIDDEN + c0:2 * HIDDEN + c0 + HEAD_SIZE]

            # scores = q @ k^T via dot_general (no explicit transpose).
            s = lax.dot_general(q, k, (((1,), (1,)), ((), ())),
                                preferred_element_type=jnp.float32)    # (S, S)

            # Numerically stable softmax; reciprocal on the EUP.
            m = jnp.max(s, axis=-1, keepdims=True)
            e = jnp.exp(s - m)
            p = e * pl.reciprocal(jnp.sum(e, axis=-1, keepdims=True), approx=True)

            ctx_ref[r0:r0 + SEQ, c0:c0 + HEAD_SIZE] = jnp.dot(
                p, v, preferred_element_type=jnp.float32)              # (S, D)

    # Output projection: one matmul on the assembled context.
    wo = w[:, 3 * HIDDEN:4 * HIDDEN]                                   # (H, H)
    bo = bias[:, 3 * HIDDEN:4 * HIDDEN]                                # (1, H)
    out = jnp.dot(ctx_ref[...], wo, preferred_element_type=jnp.float32) + bo
    o_ref[...] = out.astype(o_ref.dtype)


def multi_head_attention(x, params):
    """x: (B, S, H) float32. params: (in,out) weights and (1,out) biases (PyTorch W.T)."""
    B, S, H = x.shape
    scale = 1.0 / math.sqrt(HEAD_SIZE)

    # Pack all four linears into one lane-dense (H, 4H) weight / (1, 4H) bias,
    # with the attention scale folded into the Q columns.
    w_packed = jnp.concatenate(
        [params["wq"] * scale, params["wk"], params["wv"], params["wo"]], axis=1)
    b_packed = jnp.concatenate(
        [params["bq"] * scale, params["bk"], params["bv"], params["bo"]], axis=1)

    x2d = x.reshape(B * S, H)                     # free XLA reshape

    vmem = pl.BlockSpec(memory_space=pltpu.MemorySpace.VMEM)
    out2d = pl.pallas_call(
        mha_kernel,
        out_shape=jax.ShapeDtypeStruct((B * S, H), x.dtype),
        in_specs=[vmem, vmem, vmem],
        out_specs=vmem,
        scratch_shapes=[pltpu.VMEM((B * S, H), jnp.float32)],
    )(x2d, w_packed, b_packed)
    return out2d.reshape(B, S, H)


def init_params(key):
    """Deterministic parameter init. Weights stored as (in, out) = W_pytorch.T."""
    ks = jax.random.split(key, 8)
    bound = 1.0 / math.sqrt(HIDDEN)

    def lin(kw, kb):
        w = jax.random.uniform(kw, (HIDDEN, HIDDEN), jnp.float32, -bound, bound)
        b = jax.random.uniform(kb, (1, HIDDEN), jnp.float32, -bound, bound)
        return w, b

    wq, bq = lin(ks[0], ks[1])
    wk, bk = lin(ks[2], ks[3])
    wv, bv = lin(ks[4], ks[5])
    wo, bo = lin(ks[6], ks[7])
    return dict(wq=wq, bq=bq, wk=wk, bk=bk, wv=wv, bv=bv, wo=wo, bo=bo)


def reference_mha(x, params):
    """Pure-JAX reference mirroring the PyTorch forward (mask=None)."""
    B, S, H = x.shape
    q = x @ params["wq"] + params["bq"]
    k = x @ params["wk"] + params["bk"]
    v = x @ params["wv"] + params["bv"]
    q = q.reshape(B, S, NUM_HEADS, HEAD_SIZE).transpose(0, 2, 1, 3)
    k = k.reshape(B, S, NUM_HEADS, HEAD_SIZE).transpose(0, 2, 1, 3)
    v = v.reshape(B, S, NUM_HEADS, HEAD_SIZE).transpose(0, 2, 1, 3)
    scores = jnp.einsum("bhqd,bhkd->bhqk", q, k) / math.sqrt(HEAD_SIZE)
    probs = jax.nn.softmax(scores, axis=-1)
    ctx = jnp.einsum("bhqk,bhkd->bhqd", probs, v)
    ctx = ctx.transpose(0, 2, 1, 3).reshape(B, S, H)
    return ctx @ params["wo"] + params["bo"]


if __name__ == "__main__":
    key = jax.random.PRNGKey(0)
    kx, kp = jax.random.split(key)
    x = jax.random.normal(kx, (BATCH, SEQ, HIDDEN), jnp.float32)
    params = init_params(kp)

    out = multi_head_attention(x, params)
    out = jax.block_until_ready(out)

    ref = reference_mha(x, params)
    assert out.shape == (BATCH, SEQ, HIDDEN)
    # Tolerance accounts for the EUP approximate reciprocal in the softmax and
    # the (exact-in-math, different-rounding) scale fold into the Q weights.
    assert jnp.allclose(out, ref, atol=2e-3, rtol=2e-3), "mismatch vs reference"
    print("KERNEL_OK")
</pallas_src>

<mosaic_0001>
module attributes {stable_mosaic.version = 11 : i64} {
  func.func @mha_kernel(%arg0: memref<16x32xf32, #tpu.memory_space<vmem>>, %arg1: memref<32x128xf32, #tpu.memory_space<vmem>>, %arg2: memref<1x128xf32, #tpu.memory_space<vmem>>, %arg3: memref<16x32xf32, #tpu.memory_space<vmem>>, %arg4: memref<16x32xf32, #tpu.memory_space<vmem>>) attributes {dimension_semantics = [], scalar_prefetch = 0 : i64, scratch_operands = 1 : i64, tpu.core_type = #tpu.core_type<tc>} {
    %c0 = arith.constant 0 : index
    %c0_0 = arith.constant 0 : index
    %0 = vector.load %arg0[%c0, %c0_0] : memref<16x32xf32, #tpu.memory_space<vmem>>, vector<16x32xf32>
    %c0_1 = arith.constant 0 : index
    %c0_2 = arith.constant 0 : index
    %1 = vector.load %arg1[%c0_1, %c0_2] : memref<32x128xf32, #tpu.memory_space<vmem>>, vector<32x128xf32>
    %c0_3 = arith.constant 0 : index
    %c0_4 = arith.constant 0 : index
    %2 = vector.load %arg2[%c0_3, %c0_4] : memref<1x128xf32, #tpu.memory_space<vmem>>, vector<1x128xf32>
    %cst = arith.constant dense<0.000000e+00> : vector<16x128xf32>
    %3 = tpu.matmul %0, %1, %cst {dimension_numbers = #tpu.dot_dimension_numbers<[1], [0], [0], [1], [0, 0, 1, 1], [], []>} : vector<16x32xf32>, vector<32x128xf32>, vector<16x128xf32> -> vector<16x128xf32>
    %4 = vector.broadcast %2 : vector<1x128xf32> to vector<16x128xf32>
    %5 = arith.addf %3, %4 : vector<16x128xf32>
    %6 = vector.extract_strided_slice %5 {offsets = [0, 0], sizes = [8, 8], strides = [1, 1]} : vector<16x128xf32> to vector<8x8xf32>
    %7 = vector.extract_strided_slice %5 {offsets = [0, 32], sizes = [8, 8], strides = [1, 1]} : vector<16x128xf32> to vector<8x8xf32>
    %8 = vector.extract_strided_slice %5 {offsets = [0, 64], sizes = [8, 8], strides = [1, 1]} : vector<16x128xf32> to vector<8x8xf32>
    %cst_5 = arith.constant dense<0.000000e+00> : vector<8x8xf32>
    %9 = tpu.matmul %6, %7, %cst_5 {dimension_numbers = #tpu.dot_dimension_numbers<[1], [1], [0], [0], [0, 0, 1, 0], [], []>} : vector<8x8xf32>, vector<8x8xf32>, vector<8x8xf32> -> vector<8x8xf32>
    %cst_6 = arith.constant dense<0xFF800000> : vector<8xf32>
    %10 = vector.multi_reduction <maximumf>, %9, %cst_6 [1] : vector<8x8xf32> to vector<8xf32>
    %11 = vector.shape_cast %10 : vector<8xf32> to vector<8x1xf32>
    %12 = vector.broadcast %11 : vector<8x1xf32> to vector<8x8xf32>
    %13 = arith.subf %9, %12 : vector<8x8xf32>
    %14 = math.exp %13 : vector<8x8xf32>
    %cst_7 = arith.constant dense<0.000000e+00> : vector<8xf32>
    %15 = vector.multi_reduction <add>, %14, %cst_7 [1] : vector<8x8xf32> to vector<8xf32>
    %16 = vector.shape_cast %15 : vector<8xf32> to vector<8x1xf32>
    %17 = tpu.reciprocal %16 {approx = true} : vector<8x1xf32> -> vector<8x1xf32>
    %18 = vector.broadcast %17 : vector<8x1xf32> to vector<8x8xf32>
    %19 = arith.mulf %14, %18 : vector<8x8xf32>
    %cst_8 = arith.constant dense<0.000000e+00> : vector<8x8xf32>
    %20 = tpu.matmul %19, %8, %cst_8 {dimension_numbers = #tpu.dot_dimension_numbers<[1], [0], [0], [1], [0, 0, 1, 1], [], []>} : vector<8x8xf32>, vector<8x8xf32>, vector<8x8xf32> -> vector<8x8xf32>
    %c0_9 = arith.constant 0 : index
    %c0_10 = arith.constant 0 : index
    %21 = vector.load %arg4[%c0_9, %c0_10] : memref<16x32xf32, #tpu.memory_space<vmem>>, vector<8x8xf32>
    tpu.vector_store %arg4[%c0_9, %c0_10], %20 {strides = array<i32>} : memref<16x32xf32, #tpu.memory_space<vmem>>, vector<8x8xf32>,
    %22 = vector.extract_strided_slice %5 {offsets = [0, 8], sizes = [8, 8], strides = [1, 1]} : vector<16x128xf32> to vector<8x8xf32>
    %23 = vector.extract_strided_slice %5 {offsets = [0, 40], sizes = [8, 8], strides = [1, 1]} : vector<16x128xf32> to vector<8x8xf32>
    %24 = vector.extract_strided_slice %5 {offsets = [0, 72], sizes = [8, 8], strides = [1, 1]} : vector<16x128xf32> to vector<8x8xf32>
    %cst_11 = arith.constant dense<0.000000e+00> : vector<8x8xf32>
    %25 = tpu.matmul %22, %23, %cst_11 {dimension_numbers = #tpu.dot_dimension_numbers<[1], [1], [0], [0], [0, 0, 1, 0], [], []>} : vector<8x8xf32>, vector<8x8xf32>, vector<8x8xf32> -> vector<8x8xf32>
    %cst_12 = arith.constant dense<0xFF800000> : vector<8xf32>
    %26 = vector.multi_reduction <maximumf>, %25, %cst_12 [1] : vector<8x8xf32> to vector<8xf32>
    %27 = vector.shape_cast %26 : vector<8xf32> to vector<8x1xf32>
    %28 = vector.broadcast %27 : vector<8x1xf32> to vector<8x8xf32>
    %29 = arith.subf %25, %28 : vector<8x8xf32>
    %30 = math.exp %29 : vector<8x8xf32>
    %cst_13 = arith.constant dense<0.000000e+00> : vector<8xf32>
    %31 = vector.multi_reduction <add>, %30, %cst_13 [1] : vector<8x8xf32> to vector<8xf32>
    %32 = vector.shape_cast %31 : vector<8xf32> to vector<8x1xf32>
    %33 = tpu.reciprocal %32 {approx = true} : vector<8x1xf32> -> vector<8x1xf32>
    %34 = vector.broadcast %33 : vector<8x1xf32> to vector<8x8xf32>
    %35 = arith.mulf %30, %34 : vector<8x8xf32>
    %cst_14 = arith.constant dense<0.000000e+00> : vector<8x8xf32>
    %36 = tpu.matmul %35, %24, %cst_14 {dimension_numbers = #tpu.dot_dimension_numbers<[1], [0], [0], [1], [0, 0, 1, 1], [], []>} : vector<8x8xf32>, vector<8x8xf32>, vector<8x8xf32> -> vector<8x8xf32>
    %c0_15 = arith.constant 0 : index
    %c8 = arith.constant 8 : index
    %37 = vector.load %arg4[%c0_15, %c8] : memref<16x32xf32, #tpu.memory_space<vmem>>, vector<8x8xf32>
    tpu.vector_store %arg4[%c0_15, %c8], %36 {strides = array<i32>} : memref<16x32xf32, #tpu.memory_space<vmem>>, vector<8x8xf32>,
    %38 = vector.extract_strided_slice %5 {offsets = [0, 16], sizes = [8, 8], strides = [1, 1]} : vector<16x128xf32> to vector<8x8xf32>
    %39 = vector.extract_strided_slice %5 {offsets = [0, 48], sizes = [8, 8], strides = [1, 1]} : vector<16x128xf32> to vector<8x8xf32>
    %40 = vector.extract_strided_slice %5 {offsets = [0, 80], sizes = [8, 8], strides = [1, 1]} : vector<16x128xf32> to vector<8x8xf32>
    %cst_16 = arith.constant dense<0.000000e+00> : vector<8x8xf32>
    %41 = tpu.matmul %38, %39, %cst_16 {dimension_numbers = #tpu.dot_dimension_numbers<[1], [1], [0], [0], [0, 0, 1, 0], [], []>} : vector<8x8xf32>, vector<8x8xf32>, vector<8x8xf32> -> vector<8x8xf32>
    %cst_17 = arith.constant dense<0xFF800000> : vector<8xf32>
    %42 = vector.multi_reduction <maximumf>, %41, %cst_17 [1] : vector<8x8xf32> to vector<8xf32>
    %43 = vector.shape_cast %42 : vector<8xf32> to vector<8x1xf32>
    %44 = vector.broadcast %43 : vector<8x1xf32> to vector<8x8xf32>
    %45 = arith.subf %41, %44 : vector<8x8xf32>
    %46 = math.exp %45 : vector<8x8xf32>
    %cst_18 = arith.constant dense<0.000000e+00> : vector<8xf32>
    %47 = vector.multi_reduction <add>, %46, %cst_18 [1] : vector<8x8xf32> to vector<8xf32>
    %48 = vector.shape_cast %47 : vector<8xf32> to vector<8x1xf32>
    %49 = tpu.reciprocal %48 {approx = true} : vector<8x1xf32> -> vector<8x1xf32>
    %50 = vector.broadcast %49 : vector<8x1xf32> to vector<8x8xf32>
    %51 = arith.mulf %46, %50 : vector<8x8xf32>
    %cst_19 = arith.constant dense<0.000000e+00> : vector<8x8xf32>
    %52 = tpu.matmul %51, %40, %cst_19 {dimension_numbers = #tpu.dot_dimension_numbers<[1], [0], [0], [1], [0, 0, 1, 1], [], []>} : vector<8x8xf32>, vector<8x8xf32>, vector<8x8xf32> -> vector<8x8xf32>
    %c0_20 = arith.constant 0 : index
    %c16 = arith.constant 16 : index
    %53 = vector.load %arg4[%c0_20, %c16] : memref<16x32xf32, #tpu.memory_space<vmem>>, vector<8x8xf32>
    tpu.vector_store %arg4[%c0_20, %c16], %52 {strides = array<i32>} : memref<16x32xf32, #tpu.memory_space<vmem>>, vector<8x8xf32>,
    %54 = vector.extract_strided_slice %5 {offsets = [0, 24], sizes = [8, 8], strides = [1, 1]} : vector<16x128xf32> to vector<8x8xf32>
    %55 = vector.extract_strided_slice %5 {offsets = [0, 56], sizes = [8, 8], strides = [1, 1]} : vector<16x128xf32> to vector<8x8xf32>
    %56 = vector.extract_strided_slice %5 {offsets = [0, 88], sizes = [8, 8], strides = [1, 1]} : vector<16x128xf32> to vector<8x8xf32>
    %cst_21 = arith.constant dense<0.000000e+00> : vector<8x8xf32>
    %57 = tpu.matmul %54, %55, %cst_21 {dimension_numbers = #tpu.dot_dimension_numbers<[1], [1], [0], [0], [0, 0, 1, 0], [], []>} : vector<8x8xf32>, vector<8x8xf32>, vector<8x8xf32> -> vector<8x8xf32>
    %cst_22 = arith.constant dense<0xFF800000> : vector<8xf32>
    %58 = vector.multi_reduction <maximumf>, %57, %cst_22 [1] : vector<8x8xf32> to vector<8xf32>
    %59 = vector.shape_cast %58 : vector<8xf32> to vector<8x1xf32>
    %60 = vector.broadcast %59 : vector<8x1xf32> to vector<8x8xf32>
    %61 = arith.subf %57, %60 : vector<8x8xf32>
    %62 = math.exp %61 : vector<8x8xf32>
    %cst_23 = arith.constant dense<0.000000e+00> : vector<8xf32>
    %63 = vector.multi_reduction <add>, %62, %cst_23 [1] : vector<8x8xf32> to vector<8xf32>
    %64 = vector.shape_cast %63 : vector<8xf32> to vector<8x1xf32>
    %65 = tpu.reciprocal %64 {approx = true} : vector<8x1xf32> -> vector<8x1xf32>
    %66 = vector.broadcast %65 : vector<8x1xf32> to vector<8x8xf32>
    %67 = arith.mulf %62, %66 : vector<8x8xf32>
    %cst_24 = arith.constant dense<0.000000e+00> : vector<8x8xf32>
    %68 = tpu.matmul %67, %56, %cst_24 {dimension_numbers = #tpu.dot_dimension_numbers<[1], [0], [0], [1], [0, 0, 1, 1], [], []>} : vector<8x8xf32>, vector<8x8xf32>, vector<8x8xf32> -> vector<8x8xf32>
    %c0_25 = arith.constant 0 : index
    %c24 = arith.constant 24 : index
    %69 = vector.load %arg4[%c0_25, %c24] : memref<16x32xf32, #tpu.memory_space<vmem>>, vector<8x8xf32>
    tpu.vector_store %arg4[%c0_25, %c24], %68 {strides = array<i32>} : memref<16x32xf32, #tpu.memory_space<vmem>>, vector<8x8xf32>,
    %70 = vector.extract_strided_slice %5 {offsets = [8, 0], sizes = [8, 8], strides = [1, 1]} : vector<16x128xf32> to vector<8x8xf32>
    %71 = vector.extract_strided_slice %5 {offsets = [8, 32], sizes = [8, 8], strides = [1, 1]} : vector<16x128xf32> to vector<8x8xf32>
    %72 = vector.extract_strided_slice %5 {offsets = [8, 64], sizes = [8, 8], strides = [1, 1]} : vector<16x128xf32> to vector<8x8xf32>
    %cst_26 = arith.constant dense<0.000000e+00> : vector<8x8xf32>
    %73 = tpu.matmul %70, %71, %cst_26 {dimension_numbers = #tpu.dot_dimension_numbers<[1], [1], [0], [0], [0, 0, 1, 0], [], []>} : vector<8x8xf32>, vector<8x8xf32>, vector<8x8xf32> -> vector<8x8xf32>
    %cst_27 = arith.constant dense<0xFF800000> : vector<8xf32>
    %74 = vector.multi_reduction <maximumf>, %73, %cst_27 [1] : vector<8x8xf32> to vector<8xf32>
    %75 = vector.shape_cast %74 : vector<8xf32> to vector<8x1xf32>
    %76 = vector.broadcast %75 : vector<8x1xf32> to vector<8x8xf32>
    %77 = arith.subf %73, %76 : vector<8x8xf32>
    %78 = math.exp %77 : vector<8x8xf32>
    %cst_28 = arith.constant dense<0.000000e+00> : vector<8xf32>
    %79 = vector.multi_reduction <add>, %78, %cst_28 [1] : vector<8x8xf32> to vector<8xf32>
    %80 = vector.shape_cast %79 : vector<8xf32> to vector<8x1xf32>
    %81 = tpu.reciprocal %80 {approx = true} : vector<8x1xf32> -> vector<8x1xf32>
    %82 = vector.broadcast %81 : vector<8x1xf32> to vector<8x8xf32>
    %83 = arith.mulf %78, %82 : vector<8x8xf32>
    %cst_29 = arith.constant dense<0.000000e+00> : vector<8x8xf32>
    %84 = tpu.matmul %83, %72, %cst_29 {dimension_numbers = #tpu.dot_dimension_numbers<[1], [0], [0], [1], [0, 0, 1, 1], [], []>} : vector<8x8xf32>, vector<8x8xf32>, vector<8x8xf32> -> vector<8x8xf32>
    %c8_30 = arith.constant 8 : index
    %c0_31 = arith.constant 0 : index
    %85 = vector.load %arg4[%c8_30, %c0_31] : memref<16x32xf32, #tpu.memory_space<vmem>>, vector<8x8xf32>
    tpu.vector_store %arg4[%c8_30, %c0_31], %84 {strides = array<i32>} : memref<16x32xf32, #tpu.memory_space<vmem>>, vector<8x8xf32>,
    %86 = vector.extract_strided_slice %5 {offsets = [8, 8], sizes = [8, 8], strides = [1, 1]} : vector<16x128xf32> to vector<8x8xf32>
    %87 = vector.extract_strided_slice %5 {offsets = [8, 40], sizes = [8, 8], strides = [1, 1]} : vector<16x128xf32> to vector<8x8xf32>
    %88 = vector.extract_strided_slice %5 {offsets = [8, 72], sizes = [8, 8], strides = [1, 1]} : vector<16x128xf32> to vector<8x8xf32>
    %cst_32 = arith.constant dense<0.000000e+00> : vector<8x8xf32>
    %89 = tpu.matmul %86, %87, %cst_32 {dimension_numbers = #tpu.dot_dimension_numbers<[1], [1], [0], [0], [0, 0, 1, 0], [], []>} : vector<8x8xf32>, vector<8x8xf32>, vector<8x8xf32> -> vector<8x8xf32>
    %cst_33 = arith.constant dense<0xFF800000> : vector<8xf32>
    %90 = vector.multi_reduction <maximumf>, %89, %cst_33 [1] : vector<8x8xf32> to vector<8xf32>
    %91 = vector.shape_cast %90 : vector<8xf32> to vector<8x1xf32>
    %92 = vector.broadcast %91 : vector<8x1xf32> to vector<8x8xf32>
    %93 = arith.subf %89, %92 : vector<8x8xf32>
    %94 = math.exp %93 : vector<8x8xf32>
    %cst_34 = arith.constant dense<0.000000e+00> : vector<8xf32>
    %95 = vector.multi_reduction <add>, %94, %cst_34 [1] : vector<8x8xf32> to vector<8xf32>
    %96 = vector.shape_cast %95 : vector<8xf32> to vector<8x1xf32>
    %97 = tpu.reciprocal %96 {approx = true} : vector<8x1xf32> -> vector<8x1xf32>
    %98 = vector.broadcast %97 : vector<8x1xf32> to vector<8x8xf32>
    %99 = arith.mulf %94, %98 : vector<8x8xf32>
    %cst_35 = arith.constant dense<0.000000e+00> : vector<8x8xf32>
    %100 = tpu.matmul %99, %88, %cst_35 {dimension_numbers = #tpu.dot_dimension_numbers<[1], [0], [0], [1], [0, 0, 1, 1], [], []>} : vector<8x8xf32>, vector<8x8xf32>, vector<8x8xf32> -> vector<8x8xf32>
    %c8_36 = arith.constant 8 : index
    %c8_37 = arith.constant 8 : index
    %101 = vector.load %arg4[%c8_36, %c8_37] : memref<16x32xf32, #tpu.memory_space<vmem>>, vector<8x8xf32>
    tpu.vector_store %arg4[%c8_36, %c8_37], %100 {strides = array<i32>} : memref<16x32xf32, #tpu.memory_space<vmem>>, vector<8x8xf32>,
    %102 = vector.extract_strided_slice %5 {offsets = [8, 16], sizes = [8, 8], strides = [1, 1]} : vector<16x128xf32> to vector<8x8xf32>
    %103 = vector.extract_strided_slice %5 {offsets = [8, 48], sizes = [8, 8], strides = [1, 1]} : vector<16x128xf32> to vector<8x8xf32>
    %104 = vector.extract_strided_slice %5 {offsets = [8, 80], sizes = [8, 8], strides = [1, 1]} : vector<16x128xf32> to vector<8x8xf32>
    %cst_38 = arith.constant dense<0.000000e+00> : vector<8x8xf32>
    %105 = tpu.matmul %102, %103, %cst_38 {dimension_numbers = #tpu.dot_dimension_numbers<[1], [1], [0], [0], [0, 0, 1, 0], [], []>} : vector<8x8xf32>, vector<8x8xf32>, vector<8x8xf32> -> vector<8x8xf32>
    %cst_39 = arith.constant dense<0xFF800000> : vector<8xf32>
    %106 = vector.multi_reduction <maximumf>, %105, %cst_39 [1] : vector<8x8xf32> to vector<8xf32>
    %107 = vector.shape_cast %106 : vector<8xf32> to vector<8x1xf32>
    %108 = vector.broadcast %107 : vector<8x1xf32> to vector<8x8xf32>
    %109 = arith.subf %105, %108 : vector<8x8xf32>
    %110 = math.exp %109 : vector<8x8xf32>
    %cst_40 = arith.constant dense<0.000000e+00> : vector<8xf32>
    %111 = vector.multi_reduction <add>, %110, %cst_40 [1] : vector<8x8xf32> to vector<8xf32>
    %112 = vector.shape_cast %111 : vector<8xf32> to vector<8x1xf32>
    %113 = tpu.reciprocal %112 {approx = true} : vector<8x1xf32> -> vector<8x1xf32>
    %114 = vector.broadcast %113 : vector<8x1xf32> to vector<8x8xf32>
    %115 = arith.mulf %110, %114 : vector<8x8xf32>
    %cst_41 = arith.constant dense<0.000000e+00> : vector<8x8xf32>
    %116 = tpu.matmul %115, %104, %cst_41 {dimension_numbers = #tpu.dot_dimension_numbers<[1], [0], [0], [1], [0, 0, 1, 1], [], []>} : vector<8x8xf32>, vector<8x8xf32>, vector<8x8xf32> -> vector<8x8xf32>
    %c8_42 = arith.constant 8 : index
    %c16_43 = arith.constant 16 : index
    %117 = vector.load %arg4[%c8_42, %c16_43] : memref<16x32xf32, #tpu.memory_space<vmem>>, vector<8x8xf32>
    tpu.vector_store %arg4[%c8_42, %c16_43], %116 {strides = array<i32>} : memref<16x32xf32, #tpu.memory_space<vmem>>, vector<8x8xf32>,
    %118 = vector.extract_strided_slice %5 {offsets = [8, 24], sizes = [8, 8], strides = [1, 1]} : vector<16x128xf32> to vector<8x8xf32>
    %119 = vector.extract_strided_slice %5 {offsets = [8, 56], sizes = [8, 8], strides = [1, 1]} : vector<16x128xf32> to vector<8x8xf32>
    %120 = vector.extract_strided_slice %5 {offsets = [8, 88], sizes = [8, 8], strides = [1, 1]} : vector<16x128xf32> to vector<8x8xf32>
    %cst_44 = arith.constant dense<0.000000e+00> : vector<8x8xf32>
    %121 = tpu.matmul %118, %119, %cst_44 {dimension_numbers = #tpu.dot_dimension_numbers<[1], [1], [0], [0], [0, 0, 1, 0], [], []>} : vector<8x8xf32>, vector<8x8xf32>, vector<8x8xf32> -> vector<8x8xf32>
    %cst_45 = arith.constant dense<0xFF800000> : vector<8xf32>
    %122 = vector.multi_reduction <maximumf>, %121, %cst_45 [1] : vector<8x8xf32> to vector<8xf32>
    %123 = vector.shape_cast %122 : vector<8xf32> to vector<8x1xf32>
    %124 = vector.broadcast %123 : vector<8x1xf32> to vector<8x8xf32>
    %125 = arith.subf %121, %124 : vector<8x8xf32>
    %126 = math.exp %125 : vector<8x8xf32>
    %cst_46 = arith.constant dense<0.000000e+00> : vector<8xf32>
    %127 = vector.multi_reduction <add>, %126, %cst_46 [1] : vector<8x8xf32> to vector<8xf32>
    %128 = vector.shape_cast %127 : vector<8xf32> to vector<8x1xf32>
    %129 = tpu.reciprocal %128 {approx = true} : vector<8x1xf32> -> vector<8x1xf32>
    %130 = vector.broadcast %129 : vector<8x1xf32> to vector<8x8xf32>
    %131 = arith.mulf %126, %130 : vector<8x8xf32>
    %cst_47 = arith.constant dense<0.000000e+00> : vector<8x8xf32>
    %132 = tpu.matmul %131, %120, %cst_47 {dimension_numbers = #tpu.dot_dimension_numbers<[1], [0], [0], [1], [0, 0, 1, 1], [], []>} : vector<8x8xf32>, vector<8x8xf32>, vector<8x8xf32> -> vector<8x8xf32>
    %c8_48 = arith.constant 8 : index
    %c24_49 = arith.constant 24 : index
    %133 = vector.load %arg4[%c8_48, %c24_49] : memref<16x32xf32, #tpu.memory_space<vmem>>, vector<8x8xf32>
    tpu.vector_store %arg4[%c8_48, %c24_49], %132 {strides = array<i32>} : memref<16x32xf32, #tpu.memory_space<vmem>>, vector<8x8xf32>,
    %134 = vector.extract_strided_slice %1 {offsets = [0, 96], sizes = [32, 32], strides = [1, 1]} : vector<32x128xf32> to vector<32x32xf32>
    %135 = vector.extract_strided_slice %2 {offsets = [0, 96], sizes = [1, 32], strides = [1, 1]} : vector<1x128xf32> to vector<1x32xf32>
    %c0_50 = arith.constant 0 : index
    %c0_51 = arith.constant 0 : index
    %136 = vector.load %arg4[%c0_50, %c0_51] : memref<16x32xf32, #tpu.memory_space<vmem>>, vector<16x32xf32>
    %cst_52 = arith.constant dense<0.000000e+00> : vector<16x32xf32>
    %137 = tpu.matmul %136, %134, %cst_52 {dimension_numbers = #tpu.dot_dimension_numbers<[1], [0], [0], [1], [0, 0, 1, 1], [], []>} : vector<16x32xf32>, vector<32x32xf32>, vector<16x32xf32> -> vector<16x32xf32>
    %138 = vector.broadcast %135 : vector<1x32xf32> to vector<16x32xf32>
    %139 = arith.addf %137, %138 : vector<16x32xf32>
    %c0_53 = arith.constant 0 : index
    %c0_54 = arith.constant 0 : index
    %140 = vector.load %arg3[%c0_53, %c0_54] : memref<16x32xf32, #tpu.memory_space<vmem>>, vector<16x32xf32>
    tpu.vector_store %arg3[%c0_53, %c0_54], %139 {strides = array<i32>} : memref<16x32xf32, #tpu.memory_space<vmem>>, vector<16x32xf32>,
    return
  }
}

</mosaic_0001>

<llo_original>
// kernel: tpu_custom_call.1
$region0: #{tpu_custom_call.1}
  #allocation0 [shape = 'u32[]', space=smem, size = 0x4, offset = 0x4, fixed_abs, tag = 'smem constant byte address 0x4 - core index']
  #allocation1 [shape = 'u32[144,128]{1,0:T(1,128)}', space=vmem, size = 0x12000, scoped, tag = 'internal scratch']
  #allocation2 [shape = 'f32[16,32]{1,0:T(8,128)}', space=vmem, size = 0x2000, scoped, tag = 'scratch operand']
  %s0 = inlined_call_operand.hbm [shape: f32[16,32], index: 0, kind: input, shape index: {}]
  %s1 = inlined_call_operand.hbm [shape: f32[32,128], index: 1, kind: input, shape index: {}]
  %s2 = inlined_call_operand.vmem [shape: f32[1,128], index: 2, kind: input, shape index: {}]
  %s3 = inlined_call_operand.hbm [shape: f32[16,32], index: 3, kind: output, shape index: {}]
  %s4 = sld [smem:[#allocation0]]
  $region30: #{tpu_custom_call.1} parent=0
    _
  %s6 = ssub.s32 1, %s4
  %s7 = scalar_select 0, %s6, %s4
  $region1: #{tpu_custom_call.1} parent=0
    #allocation3 [shape = 'u8[8192]{0}', space=vmem, size = 0x2000, scoped, tag = 'input window, operand 0, single buffered']
    #allocation4 [shape = 's32[1]{0}', space=sflag, size = 0x4, scoped, tag = 'scoped memory for tpu_custom_call.1']
    #allocation5 [shape = 's32[1]{0}', space=sflag, size = 0x4, scoped, tag = 'scoped memory for tpu_custom_call.1']
    #allocation6 [shape = 'u8[16384]{0}', space=vmem, size = 0x4000, scoped, tag = 'input window, operand 1, single buffered']
    #allocation7 [shape = 's32[1]{0}', space=sflag, size = 0x4, scoped, tag = 'scoped memory for tpu_custom_call.1']
    #allocation8 [shape = 'u8[8192]{0}', space=vmem, size = 0x2000, scoped, tag = 'output window, operand 0, single buffered']
    %8 = vsyncpa [#allocation4], 0
    %9 = vsyncpa [#allocation7], 0
    %10 = vsyncpa [#allocation5], 0
    // Predicated region
    $region2: #{tpu_custom_call.1} parent=1 // pred_check
      _
    $region3: #{tpu_custom_call.1} parent=1 // pred_check_branch
      %12 = sbr.rel (0) target = $region5
    $region4: #{tpu_custom_call.1} parent=1 // pred_region
      %s14 = ssub.s32 256, 256
      %15 = vsyncadd [#allocation4], %s14
      %s16 = sshll.u32 [#allocation3], 4
      %s17 = int_to_ptr.vmem [resolvable:$true] %s16
      %22 = dma.hbm_to_vmem [thread:$0]  %s0, 256, %s17, [#allocation4], 128, 128, 8
    $region5: #{tpu_custom_call.1} parent=1 // pred_fallthru
      _
    // Predicated region
    $region6: #{tpu_custom_call.1} parent=1 // pred_check
      _
    $region7: #{tpu_custom_call.1} parent=1 // pred_check_branch
      %24 = sbr.rel (0) target = $region9
    $region8: #{tpu_custom_call.1} parent=1 // pred_region
      %s26 = ssub.s32 512, 512
      %27 = vsyncadd [#allocation7], %s26
      %s28 = sshll.u32 [#allocation6], 4
      %s29 = int_to_ptr.vmem [resolvable:$true] %s28
      %34 = dma.hbm_to_vmem [thread:$0]  %s1, 512, %s29, [#allocation7], 128, 128, 8
    $region9: #{tpu_custom_call.1} parent=1 // pred_fallthru
      _
    // Predicated region
    $region10: #{tpu_custom_call.1} parent=1 // pred_check
      _
    $region11: #{tpu_custom_call.1} parent=1 // pred_check_branch
      %36 = sbr.rel (0) target = $region13
    $region12: #{tpu_custom_call.1} parent=1 // pred_region
      _
    $region13: #{tpu_custom_call.1} parent=1 // pred_fallthru
      _
    // Predicated region
    $region14: #{tpu_custom_call.1} parent=1 // pred_check
      _
    $region15: #{tpu_custom_call.1} parent=1 // pred_check_branch
      %38 = sbr.rel (0) target = $region17
    $region16: #{tpu_custom_call.1} parent=1 // pred_region
      %39 = dma.done [#allocation4], 256
    $region17: #{tpu_custom_call.1} parent=1 // pred_fallthru
      _
    // Predicated region
    $region18: #{tpu_custom_call.1} parent=1 // pred_check
      _
    $region19: #{tpu_custom_call.1} parent=1 // pred_check_branch
      %41 = sbr.rel (0) target = $region21
    $region20: #{tpu_custom_call.1} parent=1 // pred_region
      %42 = dma.done [#allocation7], 512
    $region21: #{tpu_custom_call.1} parent=1 // pred_fallthru
      _
    %v43 = vld [vmem:[#allocation3] sm:$0xff]
    %v44 = vld [vmem:[#allocation3 + $0x8] sm:$0xff]
    %v45 = vld [vmem:[#allocation6] sm:$0xff]
    %v46 = vld [vmem:[#allocation6 + $0x8] sm:$0xff]
    %v47 = vld [vmem:[#allocation6 + $0x10] sm:$0xff]
    %v48 = vld [vmem:[#allocation6 + $0x18] sm:$0xff]
    %v49 = vld [vmem:[%s2] sm:$0x1]
    %v51 = vlaneseq
    %v52 = vshrl.u32 %v51, 7
    %v53 = vsub.s32 0, %v52
    %v54 = vrot.slane %v49, %v53
    %vm56 = vcmask 261120
    %v58 = vsel %vm56, %v43, 0
    %v61 = vsel %vm56, %v44, 0
    %63 = vmatprep.subr.mxu0 0.0
    %64 = vmatpush1.msra.mxu0 0.0
    %65 = vmatprep.subr.mxu0 0.0
    %66 = vmatpush1.msra.mxu0 0.0
    %67 = vmatprep.subr.mxu0 0.0
    %68 = vmatpush1.msra.mxu0 0.0
    %69 = vmatprep.subr.mxu0 0.0
    %70 = vmatpush1.msra.mxu0 0.0
    %71 = vmatprep.subr.mxu0 0.0
    %72 = vmatpush1.msra.mxu0 0.0
    %73 = vmatprep.subr.mxu0 0.0
    %74 = vmatpush1.msra.mxu0 0.0
    %75 = vmatprep.subr.mxu0 0.0
    %76 = vmatpush1.msra.mxu0 0.0
    %77 = vmatprep.subr.mxu0 0.0
    %78 = vmatpush1.msra.mxu0 0.0
    %79 = vmatprep.subr.mxu0 0.0
    %80 = vmatpush1.msra.mxu0 0.0
    %81 = vmatprep.subr.mxu0 0.0
    %82 = vmatpush1.msra.mxu0 0.0
    %83 = vmatprep.subr.mxu0 0.0
    %84 = vmatpush1.msra.mxu0 0.0
    %85 = vmatprep.subr.mxu0 0.0
    %86 = vmatpush1.msra.mxu0 0.0
    %87 = vmatprep.subr.mxu0 0.0
    %88 = vmatpush1.msra.mxu0 %v48
    %89 = vmatprep.subr.mxu0 0.0
    %90 = vmatpush1.msra.mxu0 %v47
    %91 = vmatprep.subr.mxu0 0.0
    %92 = vmatpush1.msra.mxu0 %v46
    %93 = vmatprep.subr.mxu0 0.0
    %94 = vmatpush1.msra.mxu0 %v45
    %95 = vmatprep.subr.mxu0 0.0
    %96 = vmatpush2.msra.mxu0 0.0
    %97 = vmatprep.subr.mxu0 0.0
    %98 = vmatpush2.msra.mxu0 0.0
    %99 = vmatprep.subr.mxu0 0.0
    %100 = vmatpush2.msra.mxu0 0.0
    %101 = vmatprep.subr.mxu0 0.0
    %102 = vmatpush2.msra.mxu0 0.0
    %103 = vmatprep.subr.mxu0 0.0
    %104 = vmatpush2.msra.mxu0 0.0
    %105 = vmatprep.subr.mxu0 0.0
    %106 = vmatpush2.msra.mxu0 0.0
    %107 = vmatprep.subr.mxu0 0.0
    %108 = vmatpush2.msra.mxu0 0.0
    %109 = vmatprep.subr.mxu0 0.0
    %110 = vmatpush2.msra.mxu0 0.0
    %111 = vmatprep.subr.mxu0 0.0
    %112 = vmatpush2.msra.mxu0 0.0
    %113 = vmatprep.subr.mxu0 0.0
    %114 = vmatpush2.msra.mxu0 0.0
    %115 = vmatprep.subr.mxu0 0.0
    %116 = vmatpush2.msra.mxu0 0.0
    %117 = vmatprep.subr.mxu0 0.0
    %118 = vmatpush2.msra.mxu0 0.0
    %119 = vmatprep.subr.mxu0 0.0
    %120 = vmatpush2.msra.mxu0 0.0
    %121 = vmatprep.subr.mxu0 0.0
    %122 = vmatpush2.msra.mxu0 0.0
    %123 = vmatprep.subr.mxu0 0.0
    %124 = vmatpush2.msra.mxu0 0.0
    %125 = vmatprep.subr.mxu0 0.0
    %126 = vmatpush2.msra.mxu0 0.0
    %127 = vmatprep.mubr.f32.mxu0 0.0
    %128 = vmatmul.mubr.f32.gmra.mxu0 %v58
    %v129 = vpop.f32.mrf.mxu0
    %v130 = vadd.f32 %v54, %v129
    %v131 = vpop.f32.mrf.mxu0
    %132 = vmatprep.mubr.f32.mxu0 0.0
    %133 = vmatmul.mubr.f32.gmra.mxu0 %v61
    %v134 = vpop.f32.mrf.mxu0
    %v135 = vadd.f32 %v54, %v134
    %v136 = vpop.f32.mrf.mxu0
    %137 = vdwg.mxu0
    %139 = vrot.lane.b32.xlu0 %v130, 96
    %v140 = vpop.permute.xlu0 %139
    %vm141 = vcmask 64512
    %v142 = vsel %vm141, %v130, 0
    %v144 = vsel %vm141, %v140, 0
    %146 = vmatprep.subr.mxu0 0.0
    %147 = vmatpush1.xpose.msra.mxu0 0.0
    %148 = vmatprep.subr.mxu0 0.0
    %149 = vmatpush1.xpose.msra.mxu0 0.0
    %150 = vmatprep.subr.mxu0 0.0
    %151 = vmatpush1.xpose.msra.mxu0 0.0
    %152 = vmatprep.subr.mxu0 0.0
    %153 = vmatpush1.xpose.msra.mxu0 0.0
    %154 = vmatprep.subr.mxu0 0.0
    %155 = vmatpush1.xpose.msra.mxu0 0.0
    %156 = vmatprep.subr.mxu0 0.0
    %157 = vmatpush1.xpose.msra.mxu0 0.0
    %158 = vmatprep.subr.mxu0 0.0
    %159 = vmatpush1.xpose.msra.mxu0 0.0
    %160 = vmatprep.subr.mxu0 0.0
    %161 = vmatpush1.xpose.msra.mxu0 0.0
    %162 = vmatprep.subr.mxu0 0.0
    %163 = vmatpush1.xpose.msra.mxu0 0.0
    %164 = vmatprep.subr.mxu0 0.0
    %165 = vmatpush1.xpose.msra.mxu0 0.0
    %166 = vmatprep.subr.mxu0 0.0
    %167 = vmatpush1.xpose.msra.mxu0 0.0
    %168 = vmatprep.subr.mxu0 0.0
    %169 = vmatpush1.xpose.msra.mxu0 0.0
    %170 = vmatprep.subr.mxu0 0.0
    %171 = vmatpush1.xpose.msra.mxu0 0.0
    %172 = vmatprep.subr.mxu0 0.0
    %173 = vmatpush1.xpose.msra.mxu0 0.0
    %174 = vmatprep.subr.mxu0 0.0
    %175 = vmatpush1.xpose.msra.mxu0 0.0
    %176 = vmatprep.subr.mxu0 0.0
    %177 = vmatpush1.xpose.msra.mxu0 %v144
    %178 = vmatprep.subr.mxu0 0.0
    %179 = vmatpush2.xpose.msra.mxu0 0.0
    %180 = vmatprep.subr.mxu0 0.0
    %181 = vmatpush2.xpose.msra.mxu0 0.0
    %182 = vmatprep.subr.mxu0 0.0
    %183 = vmatpush2.xpose.msra.mxu0 0.0
    %184 = vmatprep.subr.mxu0 0.0
    %185 = vmatpush2.xpose.msra.mxu0 0.0
    %186 = vmatprep.subr.mxu0 0.0
    %187 = vmatpush2.xpose.msra.mxu0 0.0
    %188 = vmatprep.subr.mxu0 0.0
    %189 = vmatpush2.xpose.msra.mxu0 0.0
    %190 = vmatprep.subr.mxu0 0.0
    %191 = vmatpush2.xpose.msra.mxu0 0.0
    %192 = vmatprep.subr.mxu0 0.0
    %193 = vmatpush2.xpose.msra.mxu0 0.0
    %194 = vmatprep.subr.mxu0 0.0
    %195 = vmatpush2.xpose.msra.mxu0 0.0
    %196 = vmatprep.subr.mxu0 0.0
    %197 = vmatpush2.xpose.msra.mxu0 0.0
    %198 = vmatprep.subr.mxu0 0.0
    %199 = vmatpush2.xpose.msra.mxu0 0.0
    %200 = vmatprep.subr.mxu0 0.0
    %201 = vmatpush2.xpose.msra.mxu0 0.0
    %202 = vmatprep.subr.mxu0 0.0
    %203 = vmatpush2.xpose.msra.mxu0 0.0
    %204 = vmatprep.subr.mxu0 0.0
    %205 = vmatpush2.xpose.msra.mxu0 0.0
    %206 = vmatprep.subr.mxu0 0.0
    %207 = vmatpush2.xpose.msra.mxu0 0.0
    %208 = vmatprep.subr.mxu0 0.0
    %209 = vmatpush2.xpose.msra.mxu0 0.0
    %210 = vmatprep.mubr.f32.mxu0 0.0
    %211 = vmatmul.mubr.f32.gmra.mxu0 %v142
    %v212 = vpop.f32.mrf.mxu0
    %v213 = vadd.f32 0.0, %v212
    %v214 = vpop.f32.mrf.mxu0
    %215 = vdwg.mxu0
    %v216 = vsel %vm141, %v213, -inf
    %217 = vmax.xlane.f32.xlu0 %v216
    %v218 = vpop.xlane.xlu0 %217
    %v219 = vsub.f32 %v213, %v218
    %v220 = vmul.f32 %v219, 1.442695
    %v221 = vpow.pop %v220
    %v222 = vsel %vm141, %v221, 0.0
    %223 = vadd.xlane.f32.xlu0 %v222
    %v224 = vpop.xlane.xlu0 %223
    %v225 = vrcp.pop %v224
    %v226 = vmul.f32 %v221, %v225
    %227 = vrot.lane.b32.xlu0 %v130, 64
    %v228 = vpop.permute.xlu0 %227
    %v231 = vsel %vm141, %v226, 0
    %233 = vmatprep.subr.mxu0 0.0
    %234 = vmatpush1.msra.mxu0 0.0
    %235 = vmatprep.subr.mxu0 0.0
    %236 = vmatpush1.msra.mxu0 0.0
    %237 = vmatprep.subr.mxu0 0.0
    %238 = vmatpush1.msra.mxu0 0.0
    %239 = vmatprep.subr.mxu0 0.0
    %240 = vmatpush1.msra.mxu0 0.0
    %241 = vmatprep.subr.mxu0 0.0
    %242 = vmatpush1.msra.mxu0 0.0
    %243 = vmatprep.subr.mxu0 0.0
    %244 = vmatpush1.msra.mxu0 0.0
    %245 = vmatprep.subr.mxu0 0.0
    %246 = vmatpush1.msra.mxu0 0.0
    %247 = vmatprep.subr.mxu0 0.0
    %248 = vmatpush1.msra.mxu0 0.0
    %249 = vmatprep.subr.mxu0 0.0
    %250 = vmatpush1.msra.mxu0 0.0
    %251 = vmatprep.subr.mxu0 0.0
    %252 = vmatpush1.msra.mxu0 0.0
    %253 = vmatprep.subr.mxu0 0.0
    %254 = vmatpush1.msra.mxu0 0.0
    %255 = vmatprep.subr.mxu0 0.0
    %256 = vmatpush1.msra.mxu0 0.0
    %257 = vmatprep.subr.mxu0 0.0
    %258 = vmatpush1.msra.mxu0 0.0
    %259 = vmatprep.subr.mxu0 0.0
    %260 = vmatpush1.msra.mxu0 0.0
    %261 = vmatprep.subr.mxu0 0.0
    %262 = vmatpush1.msra.mxu0 0.0
    %263 = vmatprep.subr.mxu0 0.0
    %264 = vmatpush1.msra.mxu0 %v228
    %265 = vmatprep.subr.mxu0 0.0
    %266 = vmatpush2.msra.mxu0 0.0
    %267 = vmatprep.subr.mxu0 0.0
    %268 = vmatpush2.msra.mxu0 0.0
    %269 = vmatprep.subr.mxu0 0.0
    %270 = vmatpush2.msra.mxu0 0.0
    %271 = vmatprep.subr.mxu0 0.0
    %272 = vmatpush2.msra.mxu0 0.0
    %273 = vmatprep.subr.mxu0 0.0
    %274 = vmatpush2.msra.mxu0 0.0
    %275 = vmatprep.subr.mxu0 0.0
    %276 = vmatpush2.msra.mxu0 0.0
    %277 = vmatprep.subr.mxu0 0.0
    %278 = vmatpush2.msra.mxu0 0.0
    %279 = vmatprep.subr.mxu0 0.0
    %280 = vmatpush2.msra.mxu0 0.0
    %281 = vmatprep.subr.mxu0 0.0
    %282 = vmatpush2.msra.mxu0 0.0
    %283 = vmatprep.subr.mxu0 0.0
    %284 = vmatpush2.msra.mxu0 0.0
    %285 = vmatprep.subr.mxu0 0.0
    %286 = vmatpush2.msra.mxu0 0.0
    %287 = vmatprep.subr.mxu0 0.0
    %288 = vmatpush2.msra.mxu0 0.0
    %289 = vmatprep.subr.mxu0 0.0
    %290 = vmatpush2.msra.mxu0 0.0
    %291 = vmatprep.subr.mxu0 0.0
    %292 = vmatpush2.msra.mxu0 0.0
    %293 = vmatprep.subr.mxu0 0.0
    %294 = vmatpush2.msra.mxu0 0.0
    %295 = vmatprep.subr.mxu0 0.0
    %296 = vmatpush2.msra.mxu0 0.0
    %297 = vmatprep.mubr.f32.mxu0 0.0
    %298 = vmatmul.mubr.f32.gmra.mxu0 %v231
    %v299 = vpop.f32.mrf.mxu0
    %v300 = vadd.f32 0.0, %v299
    %v301 = vpop.f32.mrf.mxu0
    %302 = vdwg.mxu0
    %303 = vst.msk [vmem:[#allocation2] sm:$0xff] %vm141, %v300
    %304 = vrot.lane.b32.xlu0 %v130, 120
    %v305 = vpop.permute.xlu0 %304
    %306 = vrot.lane.b32.xlu0 %v130, 88
    %v307 = vpop.permute.xlu0 %306
    %v308 = vsel %vm141, %v305, 0
    %v310 = vsel %vm141, %v307, 0
    %312 = vmatprep.subr.mxu0 0.0
    %313 = vmatpush1.xpose.msra.mxu0 0.0
    %314 = vmatprep.subr.mxu0 0.0
    %315 = vmatpush1.xpose.msra.mxu0 0.0
    %316 = vmatprep.subr.mxu0 0.0
    %317 = vmatpush1.xpose.msra.mxu0 0.0
    %318 = vmatprep.subr.mxu0 0.0
    %319 = vmatpush1.xpose.msra.mxu0 0.0
    %320 = vmatprep.subr.mxu0 0.0
    %321 = vmatpush1.xpose.msra.mxu0 0.0
    %322 = vmatprep.subr.mxu0 0.0
    %323 = vmatpush1.xpose.msra.mxu0 0.0
    %324 = vmatprep.subr.mxu0 0.0
    %325 = vmatpush1.xpose.msra.mxu0 0.0
    %326 = vmatprep.subr.mxu0 0.0
    %327 = vmatpush1.xpose.msra.mxu0 0.0
    %328 = vmatprep.subr.mxu0 0.0
    %329 = vmatpush1.xpose.msra.mxu0 0.0
    %330 = vmatprep.subr.mxu0 0.0
    %331 = vmatpush1.xpose.msra.mxu0 0.0
    %332 = vmatprep.subr.mxu0 0.0
    %333 = vmatpush1.xpose.msra.mxu0 0.0
    %334 = vmatprep.subr.mxu0 0.0
    %335 = vmatpush1.xpose.msra.mxu0 0.0
    %336 = vmatprep.subr.mxu0 0.0
    %337 = vmatpush1.xpose.msra.mxu0 0.0
    %338 = vmatprep.subr.mxu0 0.0
    %339 = vmatpush1.xpose.msra.mxu0 0.0
    %340 = vmatprep.subr.mxu0 0.0
    %341 = vmatpush1.xpose.msra.mxu0 0.0
    %342 = vmatprep.subr.mxu0 0.0
    %343 = vmatpush1.xpose.msra.mxu0 %v310
    %344 = vmatprep.subr.mxu0 0.0
    %345 = vmatpush2.xpose.msra.mxu0 0.0
    %346 = vmatprep.subr.mxu0 0.0
    %347 = vmatpush2.xpose.msra.mxu0 0.0
    %348 = vmatprep.subr.mxu0 0.0
    %349 = vmatpush2.xpose.msra.mxu0 0.0
    %350 = vmatprep.subr.mxu0 0.0
    %351 = vmatpush2.xpose.msra.mxu0 0.0
    %352 = vmatprep.subr.mxu0 0.0
    %353 = vmatpush2.xpose.msra.mxu0 0.0
    %354 = vmatprep.subr.mxu0 0.0
    %355 = vmatpush2.xpose.msra.mxu0 0.0
    %356 = vmatprep.subr.mxu0 0.0
    %357 = vmatpush2.xpose.msra.mxu0 0.0
    %358 = vmatprep.subr.mxu0 0.0
    %359 = vmatpush2.xpose.msra.mxu0 0.0
    %360 = vmatprep.subr.mxu0 0.0
    %361 = vmatpush2.xpose.msra.mxu0 0.0
    %362 = vmatprep.subr.mxu0 0.0
    %363 = vmatpush2.xpose.msra.mxu0 0.0
    %364 = vmatprep.subr.mxu0 0.0
    %365 = vmatpush2.xpose.msra.mxu0 0.0
    %366 = vmatprep.subr.mxu0 0.0
    %367 = vmatpush2.xpose.msra.mxu0 0.0
    %368 = vmatprep.subr.mxu0 0.0
    %369 = vmatpush2.xpose.msra.mxu0 0.0
    %370 = vmatprep.subr.mxu0 0.0
    %371 = vmatpush2.xpose.msra.mxu0 0.0
    %372 = vmatprep.subr.mxu0 0.0
    %373 = vmatpush2.xpose.msra.mxu0 0.0
    %374 = vmatprep.subr.mxu0 0.0
    %375 = vmatpush2.xpose.msra.mxu0 0.0
    %376 = vmatprep.mubr.f32.mxu0 0.0
    %377 = vmatmul.mubr.f32.gmra.mxu0 %v308
    %v378 = vpop.f32.mrf.mxu0
    %v379 = vadd.f32 0.0, %v378
    %v380 = vpop.f32.mrf.mxu0
    %381 = vdwg.mxu0
    %v382 = vsel %vm141, %v379, -inf
    %383 = vmax.xlane.f32.xlu0 %v382
    %v384 = vpop.xlane.xlu0 %383
    %v385 = vsub.f32 %v379, %v384
    %v386 = vmul.f32 %v385, 1.442695
    %v387 = vpow.pop %v386
    %v388 = vsel %vm141, %v387, 0.0
    %389 = vadd.xlane.f32.xlu0 %v388
    %v390 = vpop.xlane.xlu0 %389
    %v391 = vrcp.pop %v390
    %v392 = vmul.f32 %v387, %v391
    %393 = vrot.lane.b32.xlu0 %v130, 56
    %v394 = vpop.permute.xlu0 %393
    %v397 = vsel %vm141, %v392, 0
    %399 = vmatprep.subr.mxu0 0.0
    %400 = vmatpush1.msra.mxu0 0.0
    %401 = vmatprep.subr.mxu0 0.0
    %402 = vmatpush1.msra.mxu0 0.0
    %403 = vmatprep.subr.mxu0 0.0
    %404 = vmatpush1.msra.mxu0 0.0
    %405 = vmatprep.subr.mxu0 0.0
    %406 = vmatpush1.msra.mxu0 0.0
    %407 = vmatprep.subr.mxu0 0.0
    %408 = vmatpush1.msra.mxu0 0.0
    %409 = vmatprep.subr.mxu0 0.0
    %410 = vmatpush1.msra.mxu0 0.0
    %411 = vmatprep.subr.mxu0 0.0
    %412 = vmatpush1.msra.mxu0 0.0
    %413 = vmatprep.subr.mxu0 0.0
    %414 = vmatpush1.msra.mxu0 0.0
    %415 = vmatprep.subr.mxu0 0.0
    %416 = vmatpush1.msra.mxu0 0.0
    %417 = vmatprep.subr.mxu0 0.0
    %418 = vmatpush1.msra.mxu0 0.0
    %419 = vmatprep.subr.mxu0 0.0
    %420 = vmatpush1.msra.mxu0 0.0
    %421 = vmatprep.subr.mxu0 0.0
    %422 = vmatpush1.msra.mxu0 0.0
    %423 = vmatprep.subr.mxu0 0.0
    %424 = vmatpush1.msra.mxu0 0.0
    %425 = vmatprep.subr.mxu0 0.0
    %426 = vmatpush1.msra.mxu0 0.0
    %427 = vmatprep.subr.mxu0 0.0
    %428 = vmatpush1.msra.mxu0 0.0
    %429 = vmatprep.subr.mxu0 0.0
    %430 = vmatpush1.msra.mxu0 %v394
    %431 = vmatprep.subr.mxu0 0.0
    %432 = vmatpush2.msra.mxu0 0.0
    %433 = vmatprep.subr.mxu0 0.0
    %434 = vmatpush2.msra.mxu0 0.0
    %435 = vmatprep.subr.mxu0 0.0
    %436 = vmatpush2.msra.mxu0 0.0
    %437 = vmatprep.subr.mxu0 0.0
    %438 = vmatpush2.msra.mxu0 0.0
    %439 = vmatprep.subr.mxu0 0.0
    %440 = vmatpush2.msra.mxu0 0.0
    %441 = vmatprep.subr.mxu0 0.0
    %442 = vmatpush2.msra.mxu0 0.0
    %443 = vmatprep.subr.mxu0 0.0
    %444 = vmatpush2.msra.mxu0 0.0
    %445 = vmatprep.subr.mxu0 0.0
    %446 = vmatpush2.msra.mxu0 0.0
    %447 = vmatprep.subr.mxu0 0.0
    %448 = vmatpush2.msra.mxu0 0.0
    %449 = vmatprep.subr.mxu0 0.0
    %450 = vmatpush2.msra.mxu0 0.0
    %451 = vmatprep.subr.mxu0 0.0
    %452 = vmatpush2.msra.mxu0 0.0
    %453 = vmatprep.subr.mxu0 0.0
    %454 = vmatpush2.msra.mxu0 0.0
    %455 = vmatprep.subr.mxu0 0.0
    %456 = vmatpush2.msra.mxu0 0.0
    %457 = vmatprep.subr.mxu0 0.0
    %458 = vmatpush2.msra.mxu0 0.0
    %459 = vmatprep.subr.mxu0 0.0
    %460 = vmatpush2.msra.mxu0 0.0
    %461 = vmatprep.subr.mxu0 0.0
    %462 = vmatpush2.msra.mxu0 0.0
    %463 = vmatprep.mubr.f32.mxu0 0.0
    %464 = vmatmul.mubr.f32.gmra.mxu0 %v397
    %v465 = vpop.f32.mrf.mxu0
    %v466 = vadd.f32 0.0, %v465
    %v467 = vpop.f32.mrf.mxu0
    %468 = vdwg.mxu0
    %470 = vrot.lane.b32.xlu0 %v466, 8
    %v471 = vpop.permute.xlu0 %470
    %vm473 = vcmask 130112
    %474 = vst.msk [vmem:[#allocation2] sm:$0xff] %vm473, %v471
    %475 = vrot.lane.b32.xlu0 %v130, 112
    %v476 = vpop.permute.xlu0 %475
    %477 = vrot.lane.b32.xlu0 %v130, 80
    %v478 = vpop.permute.xlu0 %477
    %v479 = vsel %vm141, %v476, 0
    %v481 = vsel %vm141, %v478, 0
    %483 = vmatprep.subr.mxu0 0.0
    %484 = vmatpush1.xpose.msra.mxu0 0.0
    %485 = vmatprep.subr.mxu0 0.0
    %486 = vmatpush1.xpose.msra.mxu0 0.0
    %487 = vmatprep.subr.mxu0 0.0
    %488 = vmatpush1.xpose.msra.mxu0 0.0
    %489 = vmatprep.subr.mxu0 0.0
    %490 = vmatpush1.xpose.msra.mxu0 0.0
    %491 = vmatprep.subr.mxu0 0.0
    %492 = vmatpush1.xpose.msra.mxu0 0.0
    %493 = vmatprep.subr.mxu0 0.0
    %494 = vmatpush1.xpose.msra.mxu0 0.0
    %495 = vmatprep.subr.mxu0 0.0
    %496 = vmatpush1.xpose.msra.mxu0 0.0
    %497 = vmatprep.subr.mxu0 0.0
    %498 = vmatpush1.xpose.msra.mxu0 0.0
    %499 = vmatprep.subr.mxu0 0.0
    %500 = vmatpush1.xpose.msra.mxu0 0.0
    %501 = vmatprep.subr.mxu0 0.0
    %502 = vmatpush1.xpose.msra.mxu0 0.0
    %503 = vmatprep.subr.mxu0 0.0
    %504 = vmatpush1.xpose.msra.mxu0 0.0
    %505 = vmatprep.subr.mxu0 0.0
    %506 = vmatpush1.xpose.msra.mxu0 0.0
    %507 = vmatprep.subr.mxu0 0.0
    %508 = vmatpush1.xpose.msra.mxu0 0.0
    %509 = vmatprep.subr.mxu0 0.0
    %510 = vmatpush1.xpose.msra.mxu0 0.0
    %511 = vmatprep.subr.mxu0 0.0
    %512 = vmatpush1.xpose.msra.mxu0 0.0
    %513 = vmatprep.subr.mxu0 0.0
    %514 = vmatpush1.xpose.msra.mxu0 %v481
    %515 = vmatprep.subr.mxu0 0.0
    %516 = vmatpush2.xpose.msra.mxu0 0.0
    %517 = vmatprep.subr.mxu0 0.0
    %518 = vmatpush2.xpose.msra.mxu0 0.0
    %519 = vmatprep.subr.mxu0 0.0
    %520 = vmatpush2.xpose.msra.mxu0 0.0
    %521 = vmatprep.subr.mxu0 0.0
    %522 = vmatpush2.xpose.msra.mxu0 0.0
    %523 = vmatprep.subr.mxu0 0.0
    %524 = vmatpush2.xpose.msra.mxu0 0.0
    %525 = vmatprep.subr.mxu0 0.0
    %526 = vmatpush2.xpose.msra.mxu0 0.0
    %527 = vmatprep.subr.mxu0 0.0
    %528 = vmatpush2.xpose.msra.mxu0 0.0
    %529 = vmatprep.subr.mxu0 0.0
    %530 = vmatpush2.xpose.msra.mxu0 0.0
    %531 = vmatprep.subr.mxu0 0.0
    %532 = vmatpush2.xpose.msra.mxu0 0.0
    %533 = vmatprep.subr.mxu0 0.0
    %534 = vmatpush2.xpose.msra.mxu0 0.0
    %535 = vmatprep.subr.mxu0 0.0
    %536 = vmatpush2.xpose.msra.mxu0 0.0
    %537 = vmatprep.subr.mxu0 0.0
    %538 = vmatpush2.xpose.msra.mxu0 0.0
    %539 = vmatprep.subr.mxu0 0.0
    %540 = vmatpush2.xpose.msra.mxu0 0.0
    %541 = vmatprep.subr.mxu0 0.0
    %542 = vmatpush2.xpose.msra.mxu0 0.0
    %543 = vmatprep.subr.mxu0 0.0
    %544 = vmatpush2.xpose.msra.mxu0 0.0
    %545 = vmatprep.subr.mxu0 0.0
    %546 = vmatpush2.xpose.msra.mxu0 0.0
    %547 = vmatprep.mubr.f32.mxu0 0.0
    %548 = vmatmul.mubr.f32.gmra.mxu0 %v479
    %v549 = vpop.f32.mrf.mxu0
    %v550 = vadd.f32 0.0, %v549
    %v551 = vpop.f32.mrf.mxu0
    %552 = vdwg.mxu0
    %v553 = vsel %vm141, %v550, -inf
    %554 = vmax.xlane.f32.xlu0 %v553
    %v555 = vpop.xlane.xlu0 %554
    %v556 = vsub.f32 %v550, %v555
    %v557 = vmul.f32 %v556, 1.442695
    %v558 = vpow.pop %v557
    %v559 = vsel %vm141, %v558, 0.0
    %560 = vadd.xlane.f32.xlu0 %v559
    %v561 = vpop.xlane.xlu0 %560
    %v562 = vrcp.pop %v561
    %v563 = vmul.f32 %v558, %v562
    %564 = vrot.lane.b32.xlu0 %v130, 48
    %v565 = vpop.permute.xlu0 %564
    %v568 = vsel %vm141, %v563, 0
    %570 = vmatprep.subr.mxu0 0.0
    %571 = vmatpush1.msra.mxu0 0.0
    %572 = vmatprep.subr.mxu0 0.0
    %573 = vmatpush1.msra.mxu0 0.0
    %574 = vmatprep.subr.mxu0 0.0
    %575 = vmatpush1.msra.mxu0 0.0
    %576 = vmatprep.subr.mxu0 0.0
    %577 = vmatpush1.msra.mxu0 0.0
    %578 = vmatprep.subr.mxu0 0.0
    %579 = vmatpush1.msra.mxu0 0.0
    %580 = vmatprep.subr.mxu0 0.0
    %581 = vmatpush1.msra.mxu0 0.0
    %582 = vmatprep.subr.mxu0 0.0
    %583 = vmatpush1.msra.mxu0 0.0
    %584 = vmatprep.subr.mxu0 0.0
    %585 = vmatpush1.msra.mxu0 0.0
    %586 = vmatprep.subr.mxu0 0.0
    %587 = vmatpush1.msra.mxu0 0.0
    %588 = vmatprep.subr.mxu0 0.0
    %589 = vmatpush1.msra.mxu0 0.0
    %590 = vmatprep.subr.mxu0 0.0
    %591 = vmatpush1.msra.mxu0 0.0
    %592 = vmatprep.subr.mxu0 0.0
    %593 = vmatpush1.msra.mxu0 0.0
    %594 = vmatprep.subr.mxu0 0.0
    %595 = vmatpush1.msra.mxu0 0.0
    %596 = vmatprep.subr.mxu0 0.0
    %597 = vmatpush1.msra.mxu0 0.0
    %598 = vmatprep.subr.mxu0 0.0
    %599 = vmatpush1.msra.mxu0 0.0
    %600 = vmatprep.subr.mxu0 0.0
    %601 = vmatpush1.msra.mxu0 %v565
    %602 = vmatprep.subr.mxu0 0.0
    %603 = vmatpush2.msra.mxu0 0.0
    %604 = vmatprep.subr.mxu0 0.0
    %605 = vmatpush2.msra.mxu0 0.0
    %606 = vmatprep.subr.mxu0 0.0
    %607 = vmatpush2.msra.mxu0 0.0
    %608 = vmatprep.subr.mxu0 0.0
    %609 = vmatpush2.msra.mxu0 0.0
    %610 = vmatprep.subr.mxu0 0.0
    %611 = vmatpush2.msra.mxu0 0.0
    %612 = vmatprep.subr.mxu0 0.0
    %613 = vmatpush2.msra.mxu0 0.0
    %614 = vmatprep.subr.mxu0 0.0
    %615 = vmatpush2.msra.mxu0 0.0
    %616 = vmatprep.subr.mxu0 0.0
    %617 = vmatpush2.msra.mxu0 0.0
    %618 = vmatprep.subr.mxu0 0.0
    %619 = vmatpush2.msra.mxu0 0.0
    %620 = vmatprep.subr.mxu0 0.0
    %621 = vmatpush2.msra.mxu0 0.0
    %622 = vmatprep.subr.mxu0 0.0
    %623 = vmatpush2.msra.mxu0 0.0
    %624 = vmatprep.subr.mxu0 0.0
    %625 = vmatpush2.msra.mxu0 0.0
    %626 = vmatprep.subr.mxu0 0.0
    %627 = vmatpush2.msra.mxu0 0.0
    %628 = vmatprep.subr.mxu0 0.0
    %629 = vmatpush2.msra.mxu0 0.0
    %630 = vmatprep.subr.mxu0 0.0
    %631 = vmatpush2.msra.mxu0 0.0
    %632 = vmatprep.subr.mxu0 0.0
    %633 = vmatpush2.msra.mxu0 0.0
    %634 = vmatprep.mubr.f32.mxu0 0.0
    %635 = vmatmul.mubr.f32.gmra.mxu0 %v568
    %v636 = vpop.f32.mrf.mxu0
    %v637 = vadd.f32 0.0, %v636
    %v638 = vpop.f32.mrf.mxu0
    %639 = vdwg.mxu0
    %641 = vrot.lane.b32.xlu0 %v637, 16
    %v642 = vpop.permute.xlu0 %641
    %vm644 = vcmask 195712
    %645 = vst.msk [vmem:[#allocation2] sm:$0xff] %vm644, %v642
    %646 = vrot.lane.b32.xlu0 %v130, 104
    %v647 = vpop.permute.xlu0 %646
    %648 = vrot.lane.b32.xlu0 %v130, 72
    %v649 = vpop.permute.xlu0 %648
    %v650 = vsel %vm141, %v647, 0
    %v652 = vsel %vm141, %v649, 0
    %654 = vmatprep.subr.mxu0 0.0
    %655 = vmatpush1.xpose.msra.mxu0 0.0
    %656 = vmatprep.subr.mxu0 0.0
    %657 = vmatpush1.xpose.msra.mxu0 0.0
    %658 = vmatprep.subr.mxu0 0.0
    %659 = vmatpush1.xpose.msra.mxu0 0.0
    %660 = vmatprep.subr.mxu0 0.0
    %661 = vmatpush1.xpose.msra.mxu0 0.0
    %662 = vmatprep.subr.mxu0 0.0
    %663 = vmatpush1.xpose.msra.mxu0 0.0
    %664 = vmatprep.subr.mxu0 0.0
    %665 = vmatpush1.xpose.msra.mxu0 0.0
    %666 = vmatprep.subr.mxu0 0.0
    %667 = vmatpush1.xpose.msra.mxu0 0.0
    %668 = vmatprep.subr.mxu0 0.0
    %669 = vmatpush1.xpose.msra.mxu0 0.0
    %670 = vmatprep.subr.mxu0 0.0
    %671 = vmatpush1.xpose.msra.mxu0 0.0
    %672 = vmatprep.subr.mxu0 0.0
    %673 = vmatpush1.xpose.msra.mxu0 0.0
    %674 = vmatprep.subr.mxu0 0.0
    %675 = vmatpush1.xpose.msra.mxu0 0.0
    %676 = vmatprep.subr.mxu0 0.0
    %677 = vmatpush1.xpose.msra.mxu0 0.0
    %678 = vmatprep.subr.mxu0 0.0
    %679 = vmatpush1.xpose.msra.mxu0 0.0
    %680 = vmatprep.subr.mxu0 0.0
    %681 = vmatpush1.xpose.msra.mxu0 0.0
    %682 = vmatprep.subr.mxu0 0.0
    %683 = vmatpush1.xpose.msra.mxu0 0.0
    %684 = vmatprep.subr.mxu0 0.0
    %685 = vmatpush1.xpose.msra.mxu0 %v652
    %686 = vmatprep.subr.mxu0 0.0
    %687 = vmatpush2.xpose.msra.mxu0 0.0
    %688 = vmatprep.subr.mxu0 0.0
    %689 = vmatpush2.xpose.msra.mxu0 0.0
    %690 = vmatprep.subr.mxu0 0.0
    %691 = vmatpush2.xpose.msra.mxu0 0.0
    %692 = vmatprep.subr.mxu0 0.0
    %693 = vmatpush2.xpose.msra.mxu0 0.0
    %694 = vmatprep.subr.mxu0 0.0
    %695 = vmatpush2.xpose.msra.mxu0 0.0
    %696 = vmatprep.subr.mxu0 0.0
    %697 = vmatpush2.xpose.msra.mxu0 0.0
    %698 = vmatprep.subr.mxu0 0.0
    %699 = vmatpush2.xpose.msra.mxu0 0.0
    %700 = vmatprep.subr.mxu0 0.0
    %701 = vmatpush2.xpose.msra.mxu0 0.0
    %702 = vmatprep.subr.mxu0 0.0
    %703 = vmatpush2.xpose.msra.mxu0 0.0
    %704 = vmatprep.subr.mxu0 0.0
    %705 = vmatpush2.xpose.msra.mxu0 0.0
    %706 = vmatprep.subr.mxu0 0.0
    %707 = vmatpush2.xpose.msra.mxu0 0.0
    %708 = vmatprep.subr.mxu0 0.0
    %709 = vmatpush2.xpose.msra.mxu0 0.0
    %710 = vmatprep.subr.mxu0 0.0
    %711 = vmatpush2.xpose.msra.mxu0 0.0
    %712 = vmatprep.subr.mxu0 0.0
    %713 = vmatpush2.xpose.msra.mxu0 0.0
    %714 = vmatprep.subr.mxu0 0.0
    %715 = vmatpush2.xpose.msra.mxu0 0.0
    %716 = vmatprep.subr.mxu0 0.0
    %717 = vmatpush2.xpose.msra.mxu0 0.0
    %718 = vmatprep.mubr.f32.mxu0 0.0
    %719 = vmatmul.mubr.f32.gmra.mxu0 %v650
    %v720 = vpop.f32.mrf.mxu0
    %v721 = vadd.f32 0.0, %v720
    %v722 = vpop.f32.mrf.mxu0
    %723 = vdwg.mxu0
    %v724 = vsel %vm141, %v721, -inf
    %725 = vmax.xlane.f32.xlu0 %v724
    %v726 = vpop.xlane.xlu0 %725
    %v727 = vsub.f32 %v721, %v726
    %v728 = vmul.f32 %v727, 1.442695
    %v729 = vpow.pop %v728
    %v730 = vsel %vm141, %v729, 0.0
    %731 = vadd.xlane.f32.xlu0 %v730
    %v732 = vpop.xlane.xlu0 %731
    %v733 = vrcp.pop %v732
    %v734 = vmul.f32 %v729, %v733
    %735 = vrot.lane.b32.xlu0 %v130, 40
    %v736 = vpop.permute.xlu0 %735
    %v739 = vsel %vm141, %v734, 0
    %741 = vmatprep.subr.mxu0 0.0
    %742 = vmatpush1.msra.mxu0 0.0
    %743 = vmatprep.subr.mxu0 0.0
    %744 = vmatpush1.msra.mxu0 0.0
    %745 = vmatprep.subr.mxu0 0.0
    %746 = vmatpush1.msra.mxu0 0.0
    %747 = vmatprep.subr.mxu0 0.0
    %748 = vmatpush1.msra.mxu0 0.0
    %749 = vmatprep.subr.mxu0 0.0
    %750 = vmatpush1.msra.mxu0 0.0
    %751 = vmatprep.subr.mxu0 0.0
    %752 = vmatpush1.msra.mxu0 0.0
    %753 = vmatprep.subr.mxu0 0.0
    %754 = vmatpush1.msra.mxu0 0.0
    %755 = vmatprep.subr.mxu0 0.0
    %756 = vmatpush1.msra.mxu0 0.0
    %757 = vmatprep.subr.mxu0 0.0
    %758 = vmatpush1.msra.mxu0 0.0
    %759 = vmatprep.subr.mxu0 0.0
    %760 = vmatpush1.msra.mxu0 0.0
    %761 = vmatprep.subr.mxu0 0.0
    %762 = vmatpush1.msra.mxu0 0.0
    %763 = vmatprep.subr.mxu0 0.0
    %764 = vmatpush1.msra.mxu0 0.0
    %765 = vmatprep.subr.mxu0 0.0
    %766 = vmatpush1.msra.mxu0 0.0
    %767 = vmatprep.subr.mxu0 0.0
    %768 = vmatpush1.msra.mxu0 0.0
    %769 = vmatprep.subr.mxu0 0.0
    %770 = vmatpush1.msra.mxu0 0.0
    %771 = vmatprep.subr.mxu0 0.0
    %772 = vmatpush1.msra.mxu0 %v736
    %773 = vmatprep.subr.mxu0 0.0
    %774 = vmatpush2.msra.mxu0 0.0
    %775 = vmatprep.subr.mxu0 0.0
    %776 = vmatpush2.msra.mxu0 0.0
    %777 = vmatprep.subr.mxu0 0.0
    %778 = vmatpush2.msra.mxu0 0.0
    %779 = vmatprep.subr.mxu0 0.0
    %780 = vmatpush2.msra.mxu0 0.0
    %781 = vmatprep.subr.mxu0 0.0
    %782 = vmatpush2.msra.mxu0 0.0
    %783 = vmatprep.subr.mxu0 0.0
    %784 = vmatpush2.msra.mxu0 0.0
    %785 = vmatprep.subr.mxu0 0.0
    %786 = vmatpush2.msra.mxu0 0.0
    %787 = vmatprep.subr.mxu0 0.0
    %788 = vmatpush2.msra.mxu0 0.0
    %789 = vmatprep.subr.mxu0 0.0
    %790 = vmatpush2.msra.mxu0 0.0
    %791 = vmatprep.subr.mxu0 0.0
    %792 = vmatpush2.msra.mxu0 0.0
    %793 = vmatprep.subr.mxu0 0.0
    %794 = vmatpush2.msra.mxu0 0.0
    %795 = vmatprep.subr.mxu0 0.0
    %796 = vmatpush2.msra.mxu0 0.0
    %797 = vmatprep.subr.mxu0 0.0
    %798 = vmatpush2.msra.mxu0 0.0
    %799 = vmatprep.subr.mxu0 0.0
    %800 = vmatpush2.msra.mxu0 0.0
    %801 = vmatprep.subr.mxu0 0.0
    %802 = vmatpush2.msra.mxu0 0.0
    %803 = vmatprep.subr.mxu0 0.0
    %804 = vmatpush2.msra.mxu0 0.0
    %805 = vmatprep.mubr.f32.mxu0 0.0
    %806 = vmatmul.mubr.f32.gmra.mxu0 %v739
    %v807 = vpop.f32.mrf.mxu0
    %v808 = vadd.f32 0.0, %v807
    %v809 = vpop.f32.mrf.mxu0
    %810 = vdwg.mxu0
    %812 = vrot.lane.b32.xlu0 %v808, 24
    %v813 = vpop.permute.xlu0 %812
    %vm815 = vcmask 261312
    %816 = vst.msk [vmem:[#allocation2] sm:$0xff] %vm815, %v813
    %818 = vrot.lane.b32.xlu0 %v135, 96
    %v819 = vpop.permute.xlu0 %818
    %v820 = vsel %vm141, %v135, 0
    %v822 = vsel %vm141, %v819, 0
    %824 = vmatprep.subr.mxu0 0.0
    %825 = vmatpush1.xpose.msra.mxu0 0.0
    %826 = vmatprep.subr.mxu0 0.0
    %827 = vmatpush1.xpose.msra.mxu0 0.0
    %828 = vmatprep.subr.mxu0 0.0
    %829 = vmatpush1.xpose.msra.mxu0 0.0
    %830 = vmatprep.subr.mxu0 0.0
    %831 = vmatpush1.xpose.msra.mxu0 0.0
    %832 = vmatprep.subr.mxu0 0.0
    %833 = vmatpush1.xpose.msra.mxu0 0.0
    %834 = vmatprep.subr.mxu0 0.0
    %835 = vmatpush1.xpose.msra.mxu0 0.0
    %836 = vmatprep.subr.mxu0 0.0
    %837 = vmatpush1.xpose.msra.mxu0 0.0
    %838 = vmatprep.subr.mxu0 0.0
    %839 = vmatpush1.xpose.msra.mxu0 0.0
    %840 = vmatprep.subr.mxu0 0.0
    %841 = vmatpush1.xpose.msra.mxu0 0.0
    %842 = vmatprep.subr.mxu0 0.0
    %843 = vmatpush1.xpose.msra.mxu0 0.0
    %844 = vmatprep.subr.mxu0 0.0
    %845 = vmatpush1.xpose.msra.mxu0 0.0
    %846 = vmatprep.subr.mxu0 0.0
    %847 = vmatpush1.xpose.msra.mxu0 0.0
    %848 = vmatprep.subr.mxu0 0.0
    %849 = vmatpush1.xpose.msra.mxu0 0.0
    %850 = vmatprep.subr.mxu0 0.0
    %851 = vmatpush1.xpose.msra.mxu0 0.0
    %852 = vmatprep.subr.mxu0 0.0
    %853 = vmatpush1.xpose.msra.mxu0 0.0
    %854 = vmatprep.subr.mxu0 0.0
    %855 = vmatpush1.xpose.msra.mxu0 %v822
    %856 = vmatprep.subr.mxu0 0.0
    %857 = vmatpush2.xpose.msra.mxu0 0.0
    %858 = vmatprep.subr.mxu0 0.0
    %859 = vmatpush2.xpose.msra.mxu0 0.0
    %860 = vmatprep.subr.mxu0 0.0
    %861 = vmatpush2.xpose.msra.mxu0 0.0
    %862 = vmatprep.subr.mxu0 0.0
    %863 = vmatpush2.xpose.msra.mxu0 0.0
    %864 = vmatprep.subr.mxu0 0.0
    %865 = vmatpush2.xpose.msra.mxu0 0.0
    %866 = vmatprep.subr.mxu0 0.0
    %867 = vmatpush2.xpose.msra.mxu0 0.0
    %868 = vmatprep.subr.mxu0 0.0
    %869 = vmatpush2.xpose.msra.mxu0 0.0
    %870 = vmatprep.subr.mxu0 0.0
    %871 = vmatpush2.xpose.msra.mxu0 0.0
    %872 = vmatprep.subr.mxu0 0.0
    %873 = vmatpush2.xpose.msra.mxu0 0.0
    %874 = vmatprep.subr.mxu0 0.0
    %875 = vmatpush2.xpose.msra.mxu0 0.0
    %876 = vmatprep.subr.mxu0 0.0
    %877 = vmatpush2.xpose.msra.mxu0 0.0
    %878 = vmatprep.subr.mxu0 0.0
    %879 = vmatpush2.xpose.msra.mxu0 0.0
    %880 = vmatprep.subr.mxu0 0.0
    %881 = vmatpush2.xpose.msra.mxu0 0.0
    %882 = vmatprep.subr.mxu0 0.0
    %883 = vmatpush2.xpose.msra.mxu0 0.0
    %884 = vmatprep.subr.mxu0 0.0
    %885 = vmatpush2.xpose.msra.mxu0 0.0
    %886 = vmatprep.subr.mxu0 0.0
    %887 = vmatpush2.xpose.msra.mxu0 0.0
    %888 = vmatprep.mubr.f32.mxu0 0.0
    %889 = vmatmul.mubr.f32.gmra.mxu0 %v820
    %v890 = vpop.f32.mrf.mxu0
    %v891 = vadd.f32 0.0, %v890
    %v892 = vpop.f32.mrf.mxu0
    %893 = vdwg.mxu0
    %v894 = vsel %vm141, %v891, -inf
    %895 = vmax.xlane.f32.xlu0 %v894
    %v896 = vpop.xlane.xlu0 %895
    %v897 = vsub.f32 %v891, %v896
    %v898 = vmul.f32 %v897, 1.442695
    %v899 = vpow.pop %v898
    %v900 = vsel %vm141, %v899, 0.0
    %901 = vadd.xlane.f32.xlu0 %v900
    %v902 = vpop.xlane.xlu0 %901
    %v903 = vrcp.pop %v902
    %v904 = vmul.f32 %v899, %v903
    %905 = vrot.lane.b32.xlu0 %v135, 64
    %v906 = vpop.permute.xlu0 %905
    %v909 = vsel %vm141, %v904, 0
    %911 = vmatprep.subr.mxu0 0.0
    %912 = vmatpush1.msra.mxu0 0.0
    %913 = vmatprep.subr.mxu0 0.0
    %914 = vmatpush1.msra.mxu0 0.0
    %915 = vmatprep.subr.mxu0 0.0
    %916 = vmatpush1.msra.mxu0 0.0
    %917 = vmatprep.subr.mxu0 0.0
    %918 = vmatpush1.msra.mxu0 0.0
    %919 = vmatprep.subr.mxu0 0.0
    %920 = vmatpush1.msra.mxu0 0.0
    %921 = vmatprep.subr.mxu0 0.0
    %922 = vmatpush1.msra.mxu0 0.0
    %923 = vmatprep.subr.mxu0 0.0
    %924 = vmatpush1.msra.mxu0 0.0
    %925 = vmatprep.subr.mxu0 0.0
    %926 = vmatpush1.msra.mxu0 0.0
    %927 = vmatprep.subr.mxu0 0.0
    %928 = vmatpush1.msra.mxu0 0.0
    %929 = vmatprep.subr.mxu0 0.0
    %930 = vmatpush1.msra.mxu0 0.0
    %931 = vmatprep.subr.mxu0 0.0
    %932 = vmatpush1.msra.mxu0 0.0
    %933 = vmatprep.subr.mxu0 0.0
    %934 = vmatpush1.msra.mxu0 0.0
    %935 = vmatprep.subr.mxu0 0.0
    %936 = vmatpush1.msra.mxu0 0.0
    %937 = vmatprep.subr.mxu0 0.0
    %938 = vmatpush1.msra.mxu0 0.0
    %939 = vmatprep.subr.mxu0 0.0
    %940 = vmatpush1.msra.mxu0 0.0
    %941 = vmatprep.subr.mxu0 0.0
    %942 = vmatpush1.msra.mxu0 %v906
    %943 = vmatprep.subr.mxu0 0.0
    %944 = vmatpush2.msra.mxu0 0.0
    %945 = vmatprep.subr.mxu0 0.0
    %946 = vmatpush2.msra.mxu0 0.0
    %947 = vmatprep.subr.mxu0 0.0
    %948 = vmatpush2.msra.mxu0 0.0
    %949 = vmatprep.subr.mxu0 0.0
    %950 = vmatpush2.msra.mxu0 0.0
    %951 = vmatprep.subr.mxu0 0.0
    %952 = vmatpush2.msra.mxu0 0.0
    %953 = vmatprep.subr.mxu0 0.0
    %954 = vmatpush2.msra.mxu0 0.0
    %955 = vmatprep.subr.mxu0 0.0
    %956 = vmatpush2.msra.mxu0 0.0
    %957 = vmatprep.subr.mxu0 0.0
    %958 = vmatpush2.msra.mxu0 0.0
    %959 = vmatprep.subr.mxu0 0.0
    %960 = vmatpush2.msra.mxu0 0.0
    %961 = vmatprep.subr.mxu0 0.0
    %962 = vmatpush2.msra.mxu0 0.0
    %963 = vmatprep.subr.mxu0 0.0
    %964 = vmatpush2.msra.mxu0 0.0
    %965 = vmatprep.subr.mxu0 0.0
    %966 = vmatpush2.msra.mxu0 0.0
    %967 = vmatprep.subr.mxu0 0.0
    %968 = vmatpush2.msra.mxu0 0.0
    %969 = vmatprep.subr.mxu0 0.0
    %970 = vmatpush2.msra.mxu0 0.0
    %971 = vmatprep.subr.mxu0 0.0
    %972 = vmatpush2.msra.mxu0 0.0
    %973 = vmatprep.subr.mxu0 0.0
    %974 = vmatpush2.msra.mxu0 0.0
    %975 = vmatprep.mubr.f32.mxu0 0.0
    %976 = vmatmul.mubr.f32.gmra.mxu0 %v909
    %v977 = vpop.f32.mrf.mxu0
    %v978 = vadd.f32 0.0, %v977
    %v979 = vpop.f32.mrf.mxu0
    %980 = vdwg.mxu0
    %981 = vst.msk [vmem:[#allocation2 + $0x8] sm:$0xff] %vm141, %v978
    %982 = vrot.lane.b32.xlu0 %v135, 120
    %v983 = vpop.permute.xlu0 %982
    %984 = vrot.lane.b32.xlu0 %v135, 88
    %v985 = vpop.permute.xlu0 %984
    %v986 = vsel %vm141, %v983, 0
    %v988 = vsel %vm141, %v985, 0
    %990 = vmatprep.subr.mxu0 0.0
    %991 = vmatpush1.xpose.msra.mxu0 0.0
    %992 = vmatprep.subr.mxu0 0.0
    %993 = vmatpush1.xpose.msra.mxu0 0.0
    %994 = vmatprep.subr.mxu0 0.0
    %995 = vmatpush1.xpose.msra.mxu0 0.0
    %996 = vmatprep.subr.mxu0 0.0
    %997 = vmatpush1.xpose.msra.mxu0 0.0
    %998 = vmatprep.subr.mxu0 0.0
    %999 = vmatpush1.xpose.msra.mxu0 0.0
    %1000 = vmatprep.subr.mxu0 0.0
    %1001 = vmatpush1.xpose.msra.mxu0 0.0
    %1002 = vmatprep.subr.mxu0 0.0
    %1003 = vmatpush1.xpose.msra.mxu0 0.0
    %1004 = vmatprep.subr.mxu0 0.0
    %1005 = vmatpush1.xpose.msra.mxu0 0.0
    %1006 = vmatprep.subr.mxu0 0.0
    %1007 = vmatpush1.xpose.msra.mxu0 0.0
    %1008 = vmatprep.subr.mxu0 0.0
    %1009 = vmatpush1.xpose.msra.mxu0 0.0
    %1010 = vmatprep.subr.mxu0 0.0
    %1011 = vmatpush1.xpose.msra.mxu0 0.0
    %1012 = vmatprep.subr.mxu0 0.0
    %1013 = vmatpush1.xpose.msra.mxu0 0.0
    %1014 = vmatprep.subr.mxu0 0.0
    %1015 = vmatpush1.xpose.msra.mxu0 0.0
    %1016 = vmatprep.subr.mxu0 0.0
    %1017 = vmatpush1.xpose.msra.mxu0 0.0
    %1018 = vmatprep.subr.mxu0 0.0
    %1019 = vmatpush1.xpose.msra.mxu0 0.0
    %1020 = vmatprep.subr.mxu0 0.0
    %1021 = vmatpush1.xpose.msra.mxu0 %v988
    %1022 = vmatprep.subr.mxu0 0.0
    %1023 = vmatpush2.xpose.msra.mxu0 0.0
    %1024 = vmatprep.subr.mxu0 0.0
    %1025 = vmatpush2.xpose.msra.mxu0 0.0
    %1026 = vmatprep.subr.mxu0 0.0
    %1027 = vmatpush2.xpose.msra.mxu0 0.0
    %1028 = vmatprep.subr.mxu0 0.0
    %1029 = vmatpush2.xpose.msra.mxu0 0.0
    %1030 = vmatprep.subr.mxu0 0.0
    %1031 = vmatpush2.xpose.msra.mxu0 0.0
    %1032 = vmatprep.subr.mxu0 0.0
    %1033 = vmatpush2.xpose.msra.mxu0 0.0
    %1034 = vmatprep.subr.mxu0 0.0
    %1035 = vmatpush2.xpose.msra.mxu0 0.0
    %1036 = vmatprep.subr.mxu0 0.0
    %1037 = vmatpush2.xpose.msra.mxu0 0.0
    %1038 = vmatprep.subr.mxu0 0.0
    %1039 = vmatpush2.xpose.msra.mxu0 0.0
    %1040 = vmatprep.subr.mxu0 0.0
    %1041 = vmatpush2.xpose.msra.mxu0 0.0
    %1042 = vmatprep.subr.mxu0 0.0
    %1043 = vmatpush2.xpose.msra.mxu0 0.0
    %1044 = vmatprep.subr.mxu0 0.0
    %1045 = vmatpush2.xpose.msra.mxu0 0.0
    %1046 = vmatprep.subr.mxu0 0.0
    %1047 = vmatpush2.xpose.msra.mxu0 0.0
    %1048 = vmatprep.subr.mxu0 0.0
    %1049 = vmatpush2.xpose.msra.mxu0 0.0
    %1050 = vmatprep.subr.mxu0 0.0
    %1051 = vmatpush2.xpose.msra.mxu0 0.0
    %1052 = vmatprep.subr.mxu0 0.0
    %1053 = vmatpush2.xpose.msra.mxu0 0.0
    %1054 = vmatprep.mubr.f32.mxu0 0.0
    %1055 = vmatmul.mubr.f32.gmra.mxu0 %v986
    %v1056 = vpop.f32.mrf.mxu0
    %v1057 = vadd.f32 0.0, %v1056
    %v1058 = vpop.f32.mrf.mxu0
    %1059 = vdwg.mxu0
    %v1060 = vsel %vm141, %v1057, -inf
    %1061 = vmax.xlane.f32.xlu0 %v1060
    %v1062 = vpop.xlane.xlu0 %1061
    %v1063 = vsub.f32 %v1057, %v1062
    %v1064 = vmul.f32 %v1063, 1.442695
    %v1065 = vpow.pop %v1064
    %v1066 = vsel %vm141, %v1065, 0.0
    %1067 = vadd.xlane.f32.xlu0 %v1066
    %v1068 = vpop.xlane.xlu0 %1067
    %v1069 = vrcp.pop %v1068
    %v1070 = vmul.f32 %v1065, %v1069
    %1071 = vrot.lane.b32.xlu0 %v135, 56
    %v1072 = vpop.permute.xlu0 %1071
    %v1075 = vsel %vm141, %v1070, 0
    %1077 = vmatprep.subr.mxu0 0.0
    %1078 = vmatpush1.msra.mxu0 0.0
    %1079 = vmatprep.subr.mxu0 0.0
    %1080 = vmatpush1.msra.mxu0 0.0
    %1081 = vmatprep.subr.mxu0 0.0
    %1082 = vmatpush1.msra.mxu0 0.0
    %1083 = vmatprep.subr.mxu0 0.0
    %1084 = vmatpush1.msra.mxu0 0.0
    %1085 = vmatprep.subr.mxu0 0.0
    %1086 = vmatpush1.msra.mxu0 0.0
    %1087 = vmatprep.subr.mxu0 0.0
    %1088 = vmatpush1.msra.mxu0 0.0
    %1089 = vmatprep.subr.mxu0 0.0
    %1090 = vmatpush1.msra.mxu0 0.0
    %1091 = vmatprep.subr.mxu0 0.0
    %1092 = vmatpush1.msra.mxu0 0.0
    %1093 = vmatprep.subr.mxu0 0.0
    %1094 = vmatpush1.msra.mxu0 0.0
    %1095 = vmatprep.subr.mxu0 0.0
    %1096 = vmatpush1.msra.mxu0 0.0
    %1097 = vmatprep.subr.mxu0 0.0
    %1098 = vmatpush1.msra.mxu0 0.0
    %1099 = vmatprep.subr.mxu0 0.0
    %1100 = vmatpush1.msra.mxu0 0.0
    %1101 = vmatprep.subr.mxu0 0.0
    %1102 = vmatpush1.msra.mxu0 0.0
    %1103 = vmatprep.subr.mxu0 0.0
    %1104 = vmatpush1.msra.mxu0 0.0
    %1105 = vmatprep.subr.mxu0 0.0
    %1106 = vmatpush1.msra.mxu0 0.0
    %1107 = vmatprep.subr.mxu0 0.0
    %1108 = vmatpush1.msra.mxu0 %v1072
    %1109 = vmatprep.subr.mxu0 0.0
    %1110 = vmatpush2.msra.mxu0 0.0
    %1111 = vmatprep.subr.mxu0 0.0
    %1112 = vmatpush2.msra.mxu0 0.0
    %1113 = vmatprep.subr.mxu0 0.0
    %1114 = vmatpush2.msra.mxu0 0.0
    %1115 = vmatprep.subr.mxu0 0.0
    %1116 = vmatpush2.msra.mxu0 0.0
    %1117 = vmatprep.subr.mxu0 0.0
    %1118 = vmatpush2.msra.mxu0 0.0
    %1119 = vmatprep.subr.mxu0 0.0
    %1120 = vmatpush2.msra.mxu0 0.0
    %1121 = vmatprep.subr.mxu0 0.0
    %1122 = vmatpush2.msra.mxu0 0.0
    %1123 = vmatprep.subr.mxu0 0.0
    %1124 = vmatpush2.msra.mxu0 0.0
    %1125 = vmatprep.subr.mxu0 0.0
    %1126 = vmatpush2.msra.mxu0 0.0
    %1127 = vmatprep.subr.mxu0 0.0
    %1128 = vmatpush2.msra.mxu0 0.0
    %1129 = vmatprep.subr.mxu0 0.0
    %1130 = vmatpush2.msra.mxu0 0.0
    %1131 = vmatprep.subr.mxu0 0.0
    %1132 = vmatpush2.msra.mxu0 0.0
    %1133 = vmatprep.subr.mxu0 0.0
    %1134 = vmatpush2.msra.mxu0 0.0
    %1135 = vmatprep.subr.mxu0 0.0
    %1136 = vmatpush2.msra.mxu0 0.0
    %1137 = vmatprep.subr.mxu0 0.0
    %1138 = vmatpush2.msra.mxu0 0.0
    %1139 = vmatprep.subr.mxu0 0.0
    %1140 = vmatpush2.msra.mxu0 0.0
    %1141 = vmatprep.mubr.f32.mxu0 0.0
    %1142 = vmatmul.mubr.f32.gmra.mxu0 %v1075
    %v1143 = vpop.f32.mrf.mxu0
    %v1144 = vadd.f32 0.0, %v1143
    %v1145 = vpop.f32.mrf.mxu0
    %1146 = vdwg.mxu0
    %1148 = vrot.lane.b32.xlu0 %v1144, 8
    %v1149 = vpop.permute.xlu0 %1148
    %1151 = vst.msk [vmem:[#allocation2 + $0x8] sm:$0xff] %vm473, %v1149
    %1152 = vrot.lane.b32.xlu0 %v135, 112
    %v1153 = vpop.permute.xlu0 %1152
    %1154 = vrot.lane.b32.xlu0 %v135, 80
    %v1155 = vpop.permute.xlu0 %1154
    %v1156 = vsel %vm141, %v1153, 0
    %v1158 = vsel %vm141, %v1155, 0
    %1160 = vmatprep.subr.mxu0 0.0
    %1161 = vmatpush1.xpose.msra.mxu0 0.0
    %1162 = vmatprep.subr.mxu0 0.0
    %1163 = vmatpush1.xpose.msra.mxu0 0.0
    %1164 = vmatprep.subr.mxu0 0.0
    %1165 = vmatpush1.xpose.msra.mxu0 0.0
    %1166 = vmatprep.subr.mxu0 0.0
    %1167 = vmatpush1.xpose.msra.mxu0 0.0
    %1168 = vmatprep.subr.mxu0 0.0
    %1169 = vmatpush1.xpose.msra.mxu0 0.0
    %1170 = vmatprep.subr.mxu0 0.0
    %1171 = vmatpush1.xpose.msra.mxu0 0.0
    %1172 = vmatprep.subr.mxu0 0.0
    %1173 = vmatpush1.xpose.msra.mxu0 0.0
    %1174 = vmatprep.subr.mxu0 0.0
    %1175 = vmatpush1.xpose.msra.mxu0 0.0
    %1176 = vmatprep.subr.mxu0 0.0
    %1177 = vmatpush1.xpose.msra.mxu0 0.0
    %1178 = vmatprep.subr.mxu0 0.0
    %1179 = vmatpush1.xpose.msra.mxu0 0.0
    %1180 = vmatprep.subr.mxu0 0.0
    %1181 = vmatpush1.xpose.msra.mxu0 0.0
    %1182 = vmatprep.subr.mxu0 0.0
    %1183 = vmatpush1.xpose.msra.mxu0 0.0
    %1184 = vmatprep.subr.mxu0 0.0
    %1185 = vmatpush1.xpose.msra.mxu0 0.0
    %1186 = vmatprep.subr.mxu0 0.0
    %1187 = vmatpush1.xpose.msra.mxu0 0.0
    %1188 = vmatprep.subr.mxu0 0.0
    %1189 = vmatpush1.xpose.msra.mxu0 0.0
    %1190 = vmatprep.subr.mxu0 0.0
    %1191 = vmatpush1.xpose.msra.mxu0 %v1158
    %1192 = vmatprep.subr.mxu0 0.0
    %1193 = vmatpush2.xpose.msra.mxu0 0.0
    %1194 = vmatprep.subr.mxu0 0.0
    %1195 = vmatpush2.xpose.msra.mxu0 0.0
    %1196 = vmatprep.subr.mxu0 0.0
    %1197 = vmatpush2.xpose.msra.mxu0 0.0
    %1198 = vmatprep.subr.mxu0 0.0
    %1199 = vmatpush2.xpose.msra.mxu0 0.0
    %1200 = vmatprep.subr.mxu0 0.0
    %1201 = vmatpush2.xpose.msra.mxu0 0.0
    %1202 = vmatprep.subr.mxu0 0.0
    %1203 = vmatpush2.xpose.msra.mxu0 0.0
    %1204 = vmatprep.subr.mxu0 0.0
    %1205 = vmatpush2.xpose.msra.mxu0 0.0
    %1206 = vmatprep.subr.mxu0 0.0
    %1207 = vmatpush2.xpose.msra.mxu0 0.0
    %1208 = vmatprep.subr.mxu0 0.0
    %1209 = vmatpush2.xpose.msra.mxu0 0.0
    %1210 = vmatprep.subr.mxu0 0.0
    %1211 = vmatpush2.xpose.msra.mxu0 0.0
    %1212 = vmatprep.subr.mxu0 0.0
    %1213 = vmatpush2.xpose.msra.mxu0 0.0
    %1214 = vmatprep.subr.mxu0 0.0
    %1215 = vmatpush2.xpose.msra.mxu0 0.0
    %1216 = vmatprep.subr.mxu0 0.0
    %1217 = vmatpush2.xpose.msra.mxu0 0.0
    %1218 = vmatprep.subr.mxu0 0.0
    %1219 = vmatpush2.xpose.msra.mxu0 0.0
    %1220 = vmatprep.subr.mxu0 0.0
    %1221 = vmatpush2.xpose.msra.mxu0 0.0
    %1222 = vmatprep.subr.mxu0 0.0
    %1223 = vmatpush2.xpose.msra.mxu0 0.0
    %1224 = vmatprep.mubr.f32.mxu0 0.0
    %1225 = vmatmul.mubr.f32.gmra.mxu0 %v1156
    %v1226 = vpop.f32.mrf.mxu0
    %v1227 = vadd.f32 0.0, %v1226
    %v1228 = vpop.f32.mrf.mxu0
    %1229 = vdwg.mxu0
    %v1230 = vsel %vm141, %v1227, -inf
    %1231 = vmax.xlane.f32.xlu0 %v1230
    %v1232 = vpop.xlane.xlu0 %1231
    %v1233 = vsub.f32 %v1227, %v1232
    %v1234 = vmul.f32 %v1233, 1.442695
    %v1235 = vpow.pop %v1234
    %v1236 = vsel %vm141, %v1235, 0.0
    %1237 = vadd.xlane.f32.xlu0 %v1236
    %v1238 = vpop.xlane.xlu0 %1237
    %v1239 = vrcp.pop %v1238
    %v1240 = vmul.f32 %v1235, %v1239
    %1241 = vrot.lane.b32.xlu0 %v135, 48
    %v1242 = vpop.permute.xlu0 %1241
    %v1245 = vsel %vm141, %v1240, 0
    %1247 = vmatprep.subr.mxu0 0.0
    %1248 = vmatpush1.msra.mxu0 0.0
    %1249 = vmatprep.subr.mxu0 0.0
    %1250 = vmatpush1.msra.mxu0 0.0
    %1251 = vmatprep.subr.mxu0 0.0
    %1252 = vmatpush1.msra.mxu0 0.0
    %1253 = vmatprep.subr.mxu0 0.0
    %1254 = vmatpush1.msra.mxu0 0.0
    %1255 = vmatprep.subr.mxu0 0.0
    %1256 = vmatpush1.msra.mxu0 0.0
    %1257 = vmatprep.subr.mxu0 0.0
    %1258 = vmatpush1.msra.mxu0 0.0
    %1259 = vmatprep.subr.mxu0 0.0
    %1260 = vmatpush1.msra.mxu0 0.0
    %1261 = vmatprep.subr.mxu0 0.0
    %1262 = vmatpush1.msra.mxu0 0.0
    %1263 = vmatprep.subr.mxu0 0.0
    %1264 = vmatpush1.msra.mxu0 0.0
    %1265 = vmatprep.subr.mxu0 0.0
    %1266 = vmatpush1.msra.mxu0 0.0
    %1267 = vmatprep.subr.mxu0 0.0
    %1268 = vmatpush1.msra.mxu0 0.0
    %1269 = vmatprep.subr.mxu0 0.0
    %1270 = vmatpush1.msra.mxu0 0.0
    %1271 = vmatprep.subr.mxu0 0.0
    %1272 = vmatpush1.msra.mxu0 0.0
    %1273 = vmatprep.subr.mxu0 0.0
    %1274 = vmatpush1.msra.mxu0 0.0
    %1275 = vmatprep.subr.mxu0 0.0
    %1276 = vmatpush1.msra.mxu0 0.0
    %1277 = vmatprep.subr.mxu0 0.0
    %1278 = vmatpush1.msra.mxu0 %v1242
    %1279 = vmatprep.subr.mxu0 0.0
    %1280 = vmatpush2.msra.mxu0 0.0
    %1281 = vmatprep.subr.mxu0 0.0
    %1282 = vmatpush2.msra.mxu0 0.0
    %1283 = vmatprep.subr.mxu0 0.0
    %1284 = vmatpush2.msra.mxu0 0.0
    %1285 = vmatprep.subr.mxu0 0.0
    %1286 = vmatpush2.msra.mxu0 0.0
    %1287 = vmatprep.subr.mxu0 0.0
    %1288 = vmatpush2.msra.mxu0 0.0
    %1289 = vmatprep.subr.mxu0 0.0
    %1290 = vmatpush2.msra.mxu0 0.0
    %1291 = vmatprep.subr.mxu0 0.0
    %1292 = vmatpush2.msra.mxu0 0.0
    %1293 = vmatprep.subr.mxu0 0.0
    %1294 = vmatpush2.msra.mxu0 0.0
    %1295 = vmatprep.subr.mxu0 0.0
    %1296 = vmatpush2.msra.mxu0 0.0
    %1297 = vmatprep.subr.mxu0 0.0
    %1298 = vmatpush2.msra.mxu0 0.0
    %1299 = vmatprep.subr.mxu0 0.0
    %1300 = vmatpush2.msra.mxu0 0.0
    %1301 = vmatprep.subr.mxu0 0.0
    %1302 = vmatpush2.msra.mxu0 0.0
    %1303 = vmatprep.subr.mxu0 0.0
    %1304 = vmatpush2.msra.mxu0 0.0
    %1305 = vmatprep.subr.mxu0 0.0
    %1306 = vmatpush2.msra.mxu0 0.0
    %1307 = vmatprep.subr.mxu0 0.0
    %1308 = vmatpush2.msra.mxu0 0.0
    %1309 = vmatprep.subr.mxu0 0.0
    %1310 = vmatpush2.msra.mxu0 0.0
    %1311 = vmatprep.mubr.f32.mxu0 0.0
    %1312 = vmatmul.mubr.f32.gmra.mxu0 %v1245
    %v1313 = vpop.f32.mrf.mxu0
    %v1314 = vadd.f32 0.0, %v1313
    %v1315 = vpop.f32.mrf.mxu0
    %1316 = vdwg.mxu0
    %1318 = vrot.lane.b32.xlu0 %v1314, 16
    %v1319 = vpop.permute.xlu0 %1318
    %1321 = vst.msk [vmem:[#allocation2 + $0x8] sm:$0xff] %vm644, %v1319
    %1322 = vrot.lane.b32.xlu0 %v135, 104
    %v1323 = vpop.permute.xlu0 %1322
    %1324 = vrot.lane.b32.xlu0 %v135, 72
    %v1325 = vpop.permute.xlu0 %1324
    %v1326 = vsel %vm141, %v1323, 0
    %v1328 = vsel %vm141, %v1325, 0
    %1330 = vmatprep.subr.mxu0 0.0
    %1331 = vmatpush1.xpose.msra.mxu0 0.0
    %1332 = vmatprep.subr.mxu0 0.0
    %1333 = vmatpush1.xpose.msra.mxu0 0.0
    %1334 = vmatprep.subr.mxu0 0.0
    %1335 = vmatpush1.xpose.msra.mxu0 0.0
    %1336 = vmatprep.subr.mxu0 0.0
    %1337 = vmatpush1.xpose.msra.mxu0 0.0
    %1338 = vmatprep.subr.mxu0 0.0
    %1339 = vmatpush1.xpose.msra.mxu0 0.0
    %1340 = vmatprep.subr.mxu0 0.0
    %1341 = vmatpush1.xpose.msra.mxu0 0.0
    %1342 = vmatprep.subr.mxu0 0.0
    %1343 = vmatpush1.xpose.msra.mxu0 0.0
    %1344 = vmatprep.subr.mxu0 0.0
    %1345 = vmatpush1.xpose.msra.mxu0 0.0
    %1346 = vmatprep.subr.mxu0 0.0
    %1347 = vmatpush1.xpose.msra.mxu0 0.0
    %1348 = vmatprep.subr.mxu0 0.0
    %1349 = vmatpush1.xpose.msra.mxu0 0.0
    %1350 = vmatprep.subr.mxu0 0.0
    %1351 = vmatpush1.xpose.msra.mxu0 0.0
    %1352 = vmatprep.subr.mxu0 0.0
    %1353 = vmatpush1.xpose.msra.mxu0 0.0
    %1354 = vmatprep.subr.mxu0 0.0
    %1355 = vmatpush1.xpose.msra.mxu0 0.0
    %1356 = vmatprep.subr.mxu0 0.0
    %1357 = vmatpush1.xpose.msra.mxu0 0.0
    %1358 = vmatprep.subr.mxu0 0.0
    %1359 = vmatpush1.xpose.msra.mxu0 0.0
    %1360 = vmatprep.subr.mxu0 0.0
    %1361 = vmatpush1.xpose.msra.mxu0 %v1328
    %1362 = vmatprep.subr.mxu0 0.0
    %1363 = vmatpush2.xpose.msra.mxu0 0.0
    %1364 = vmatprep.subr.mxu0 0.0
    %1365 = vmatpush2.xpose.msra.mxu0 0.0
    %1366 = vmatprep.subr.mxu0 0.0
    %1367 = vmatpush2.xpose.msra.mxu0 0.0
    %1368 = vmatprep.subr.mxu0 0.0
    %1369 = vmatpush2.xpose.msra.mxu0 0.0
    %1370 = vmatprep.subr.mxu0 0.0
    %1371 = vmatpush2.xpose.msra.mxu0 0.0
    %1372 = vmatprep.subr.mxu0 0.0
    %1373 = vmatpush2.xpose.msra.mxu0 0.0
    %1374 = vmatprep.subr.mxu0 0.0
    %1375 = vmatpush2.xpose.msra.mxu0 0.0
    %1376 = vmatprep.subr.mxu0 0.0
    %1377 = vmatpush2.xpose.msra.mxu0 0.0
    %1378 = vmatprep.subr.mxu0 0.0
    %1379 = vmatpush2.xpose.msra.mxu0 0.0
    %1380 = vmatprep.subr.mxu0 0.0
    %1381 = vmatpush2.xpose.msra.mxu0 0.0
    %1382 = vmatprep.subr.mxu0 0.0
    %1383 = vmatpush2.xpose.msra.mxu0 0.0
    %1384 = vmatprep.subr.mxu0 0.0
    %1385 = vmatpush2.xpose.msra.mxu0 0.0
    %1386 = vmatprep.subr.mxu0 0.0
    %1387 = vmatpush2.xpose.msra.mxu0 0.0
    %1388 = vmatprep.subr.mxu0 0.0
    %1389 = vmatpush2.xpose.msra.mxu0 0.0
    %1390 = vmatprep.subr.mxu0 0.0
    %1391 = vmatpush2.xpose.msra.mxu0 0.0
    %1392 = vmatprep.subr.mxu0 0.0
    %1393 = vmatpush2.xpose.msra.mxu0 0.0
    %1394 = vmatprep.mubr.f32.mxu0 0.0
    %1395 = vmatmul.mubr.f32.gmra.mxu0 %v1326
    %v1396 = vpop.f32.mrf.mxu0
    %v1397 = vadd.f32 0.0, %v1396
    %v1398 = vpop.f32.mrf.mxu0
    %1399 = vdwg.mxu0
    %v1400 = vsel %vm141, %v1397, -inf
    %1401 = vmax.xlane.f32.xlu0 %v1400
    %v1402 = vpop.xlane.xlu0 %1401
    %v1403 = vsub.f32 %v1397, %v1402
    %v1404 = vmul.f32 %v1403, 1.442695
    %v1405 = vpow.pop %v1404
    %v1406 = vsel %vm141, %v1405, 0.0
    %1407 = vadd.xlane.f32.xlu0 %v1406
    %v1408 = vpop.xlane.xlu0 %1407
    %v1409 = vrcp.pop %v1408
    %v1410 = vmul.f32 %v1405, %v1409
    %1411 = vrot.lane.b32.xlu0 %v135, 40
    %v1412 = vpop.permute.xlu0 %1411
    %v1415 = vsel %vm141, %v1410, 0
    %1417 = vmatprep.subr.mxu0 0.0
    %1418 = vmatpush1.msra.mxu0 0.0
    %1419 = vmatprep.subr.mxu0 0.0
    %1420 = vmatpush1.msra.mxu0 0.0
    %1421 = vmatprep.subr.mxu0 0.0
    %1422 = vmatpush1.msra.mxu0 0.0
    %1423 = vmatprep.subr.mxu0 0.0
    %1424 = vmatpush1.msra.mxu0 0.0
    %1425 = vmatprep.subr.mxu0 0.0
    %1426 = vmatpush1.msra.mxu0 0.0
    %1427 = vmatprep.subr.mxu0 0.0
    %1428 = vmatpush1.msra.mxu0 0.0
    %1429 = vmatprep.subr.mxu0 0.0
    %1430 = vmatpush1.msra.mxu0 0.0
    %1431 = vmatprep.subr.mxu0 0.0
    %1432 = vmatpush1.msra.mxu0 0.0
    %1433 = vmatprep.subr.mxu0 0.0
    %1434 = vmatpush1.msra.mxu0 0.0
    %1435 = vmatprep.subr.mxu0 0.0
    %1436 = vmatpush1.msra.mxu0 0.0
    %1437 = vmatprep.subr.mxu0 0.0
    %1438 = vmatpush1.msra.mxu0 0.0
    %1439 = vmatprep.subr.mxu0 0.0
    %1440 = vmatpush1.msra.mxu0 0.0
    %1441 = vmatprep.subr.mxu0 0.0
    %1442 = vmatpush1.msra.mxu0 0.0
    %1443 = vmatprep.subr.mxu0 0.0
    %1444 = vmatpush1.msra.mxu0 0.0
    %1445 = vmatprep.subr.mxu0 0.0
    %1446 = vmatpush1.msra.mxu0 0.0
    %1447 = vmatprep.subr.mxu0 0.0
    %1448 = vmatpush1.msra.mxu0 %v1412
    %1449 = vmatprep.subr.mxu0 0.0
    %1450 = vmatpush2.msra.mxu0 0.0
    %1451 = vmatprep.subr.mxu0 0.0
    %1452 = vmatpush2.msra.mxu0 0.0
    %1453 = vmatprep.subr.mxu0 0.0
    %1454 = vmatpush2.msra.mxu0 0.0
    %1455 = vmatprep.subr.mxu0 0.0
    %1456 = vmatpush2.msra.mxu0 0.0
    %1457 = vmatprep.subr.mxu0 0.0
    %1458 = vmatpush2.msra.mxu0 0.0
    %1459 = vmatprep.subr.mxu0 0.0
    %1460 = vmatpush2.msra.mxu0 0.0
    %1461 = vmatprep.subr.mxu0 0.0
    %1462 = vmatpush2.msra.mxu0 0.0
    %1463 = vmatprep.subr.mxu0 0.0
    %1464 = vmatpush2.msra.mxu0 0.0
    %1465 = vmatprep.subr.mxu0 0.0
    %1466 = vmatpush2.msra.mxu0 0.0
    %1467 = vmatprep.subr.mxu0 0.0
    %1468 = vmatpush2.msra.mxu0 0.0
    %1469 = vmatprep.subr.mxu0 0.0
    %1470 = vmatpush2.msra.mxu0 0.0
    %1471 = vmatprep.subr.mxu0 0.0
    %1472 = vmatpush2.msra.mxu0 0.0
    %1473 = vmatprep.subr.mxu0 0.0
    %1474 = vmatpush2.msra.mxu0 0.0
    %1475 = vmatprep.subr.mxu0 0.0
    %1476 = vmatpush2.msra.mxu0 0.0
    %1477 = vmatprep.subr.mxu0 0.0
    %1478 = vmatpush2.msra.mxu0 0.0
    %1479 = vmatprep.subr.mxu0 0.0
    %1480 = vmatpush2.msra.mxu0 0.0
    %1481 = vmatprep.mubr.f32.mxu0 0.0
    %1482 = vmatmul.mubr.f32.gmra.mxu0 %v1415
    %v1483 = vpop.f32.mrf.mxu0
    %v1484 = vadd.f32 0.0, %v1483
    %v1485 = vpop.f32.mrf.mxu0
    %1486 = vdwg.mxu0
    %1488 = vrot.lane.b32.xlu0 %v1484, 24
    %v1489 = vpop.permute.xlu0 %1488
    %1491 = vst.msk [vmem:[#allocation2 + $0x8] sm:$0xff] %vm815, %v1489
    %v1492 = vld [vmem:[#allocation2] sm:$0xff]
    %v1493 = vld [vmem:[#allocation2 + $0x8] sm:$0xff]
    %1498 = vrot.lane.b32.xlu0 %v45, 32
    %v1499 = vpop.permute.xlu0 %1498
    %1500 = vrot.lane.b32.xlu0 %v46, 32
    %v1501 = vpop.permute.xlu0 %1500
    %1502 = vrot.lane.b32.xlu0 %v47, 32
    %v1503 = vpop.permute.xlu0 %1502
    %1504 = vrot.lane.b32.xlu0 %v48, 32
    %v1505 = vpop.permute.xlu0 %1504
    %1510 = vrot.lane.b32.xlu0 %v54, 32
    %v1511 = vpop.permute.xlu0 %1510
    %v1514 = vsel %vm56, %v1492, 0
    %v1517 = vsel %vm56, %v1493, 0
    %1519 = vmatprep.subr.mxu0 0.0
    %1520 = vmatpush1.msra.mxu0 0.0
    %1521 = vmatprep.subr.mxu0 0.0
    %1522 = vmatpush1.msra.mxu0 0.0
    %1523 = vmatprep.subr.mxu0 0.0
    %1524 = vmatpush1.msra.mxu0 0.0
    %1525 = vmatprep.subr.mxu0 0.0
    %1526 = vmatpush1.msra.mxu0 0.0
    %1527 = vmatprep.subr.mxu0 0.0
    %1528 = vmatpush1.msra.mxu0 0.0
    %1529 = vmatprep.subr.mxu0 0.0
    %1530 = vmatpush1.msra.mxu0 0.0
    %1531 = vmatprep.subr.mxu0 0.0
    %1532 = vmatpush1.msra.mxu0 0.0
    %1533 = vmatprep.subr.mxu0 0.0
    %1534 = vmatpush1.msra.mxu0 0.0
    %1535 = vmatprep.subr.mxu0 0.0
    %1536 = vmatpush1.msra.mxu0 0.0
    %1537 = vmatprep.subr.mxu0 0.0
    %1538 = vmatpush1.msra.mxu0 0.0
    %1539 = vmatprep.subr.mxu0 0.0
    %1540 = vmatpush1.msra.mxu0 0.0
    %1541 = vmatprep.subr.mxu0 0.0
    %1542 = vmatpush1.msra.mxu0 0.0
    %1543 = vmatprep.subr.mxu0 0.0
    %1544 = vmatpush1.msra.mxu0 %v1505
    %1545 = vmatprep.subr.mxu0 0.0
    %1546 = vmatpush1.msra.mxu0 %v1503
    %1547 = vmatprep.subr.mxu0 0.0
    %1548 = vmatpush1.msra.mxu0 %v1501
    %1549 = vmatprep.subr.mxu0 0.0
    %1550 = vmatpush1.msra.mxu0 %v1499
    %1551 = vmatprep.subr.mxu0 0.0
    %1552 = vmatpush2.msra.mxu0 0.0
    %1553 = vmatprep.subr.mxu0 0.0
    %1554 = vmatpush2.msra.mxu0 0.0
    %1555 = vmatprep.subr.mxu0 0.0
    %1556 = vmatpush2.msra.mxu0 0.0
    %1557 = vmatprep.subr.mxu0 0.0
    %1558 = vmatpush2.msra.mxu0 0.0
    %1559 = vmatprep.subr.mxu0 0.0
    %1560 = vmatpush2.msra.mxu0 0.0
    %1561 = vmatprep.subr.mxu0 0.0
    %1562 = vmatpush2.msra.mxu0 0.0
    %1563 = vmatprep.subr.mxu0 0.0
    %1564 = vmatpush2.msra.mxu0 0.0
    %1565 = vmatprep.subr.mxu0 0.0
    %1566 = vmatpush2.msra.mxu0 0.0
    %1567 = vmatprep.subr.mxu0 0.0
    %1568 = vmatpush2.msra.mxu0 0.0
    %1569 = vmatprep.subr.mxu0 0.0
    %1570 = vmatpush2.msra.mxu0 0.0
    %1571 = vmatprep.subr.mxu0 0.0
    %1572 = vmatpush2.msra.mxu0 0.0
    %1573 = vmatprep.subr.mxu0 0.0
    %1574 = vmatpush2.msra.mxu0 0.0
    %1575 = vmatprep.subr.mxu0 0.0
    %1576 = vmatpush2.msra.mxu0 0.0
    %1577 = vmatprep.subr.mxu0 0.0
    %1578 = vmatpush2.msra.mxu0 0.0
    %1579 = vmatprep.subr.mxu0 0.0
    %1580 = vmatpush2.msra.mxu0 0.0
    %1581 = vmatprep.subr.mxu0 0.0
    %1582 = vmatpush2.msra.mxu0 0.0
    %1583 = vmatprep.mubr.f32.mxu0 0.0
    %1584 = vmatmul.mubr.f32.gmra.mxu0 %v1514
    %v1585 = vpop.f32.mrf.mxu0
    %v1586 = vadd.f32 %v1511, %v1585
    %v1587 = vpop.f32.mrf.mxu0
    %1588 = vmatprep.mubr.f32.mxu0 0.0
    %1589 = vmatmul.mubr.f32.gmra.mxu0 %v1517
    %v1590 = vpop.f32.mrf.mxu0
    %v1591 = vadd.f32 %v1511, %v1590
    %v1592 = vpop.f32.mrf.mxu0
    %1593 = vdwg.mxu0
    %1594 = vst.msk [vmem:[#allocation8] sm:$0xff] %vm56, %v1586
    %1595 = vst.msk [vmem:[#allocation8 + $0x8] sm:$0xff] %vm56, %v1591
    // Predicated region
    $region22: #{tpu_custom_call.1} parent=1 // pred_check
      _
    $region23: #{tpu_custom_call.1} parent=1 // pred_check_branch
      %1597 = sbr.rel (0) target = $region25
    $region24: #{tpu_custom_call.1} parent=1 // pred_region
      %s1599 = ssub.s32 256, 256
      %1600 = vsyncadd [#allocation5], %s1599
      %s1601 = sshll.u32 [#allocation8], 4
      %s1602 = int_to_ptr.vmem [resolvable:$true] %s1601
      %1607 = dma.vmem_to_hbm [thread:$0]  %s1602, 256, %s3, [#allocation5], 128, 128, 8
    $region25: #{tpu_custom_call.1} parent=1 // pred_fallthru
      _
    // Predicated region
    $region26: #{tpu_custom_call.1} parent=1 // pred_check
      _
    $region27: #{tpu_custom_call.1} parent=1 // pred_check_branch
      %1609 = sbr.rel (0) target = $region29
    $region28: #{tpu_custom_call.1} parent=1 // pred_region
      %1610 = dma.done [#allocation5], 256
    $region29: #{tpu_custom_call.1} parent=1 // pred_fallthru
      _
    %1611 = vsyncpa [#allocation4], 1
    %1612 = vsyncpa [#allocation7], 1
    %1613 = vsyncpa [#allocation5], 1

</llo_original>
